<compile_context>
chip_gen: v7x
topology: tpu7x:2x2x1
jax: 0.10.0
libtpu: 0.0.40
codegen_flags: <defaults>
</compile_context>

<pallas_src>
import functools
import math

import numpy as np
import jax
import jax.numpy as jnp
from jax.experimental import pallas as pl
from jax.experimental.pallas import tpu as pltpu


def _hyperzzw_kernel(num_layers, data_dim, hidden, o_pad,
                     pix_ref, mat_ref, vec_ref, out_ref):
    """Whole MFN forward in channels-first ([channels, pixels]) layout.

    pix_ref : [D+1, TP]  f32  rows 0..D-1 = coords (natural NCHW flat form),
                              row D = per-pixel bias_p
    mat_ref : [R, H]     f32  rows [0, (L+1)H)        stacked filter weights
                              rows [(L+1)H, (2L+1)H)  hidden linears (L x [H,H])
                              rows [(2L+1)H, +O_pad)  output linear [O_pad, H]
    vec_ref : [H, L+1]   f32  cols 0..L-1 = hidden-linear biases (as columns),
                              col L (rows 0..O_pad-1) = output-linear bias
    out_ref : [O_pad, TP] f32 lane-dense, already NCHW channel-ordered
    """
    L, D, H = num_layers, data_dim, hidden
    P = out_ref.shape[1]
    HS = (L + 1) * H

    # Hoisted [1,P] -> [H,P] sublane broadcast of bias_p; leaving it inside the
    # unrolled layer loop would re-emit it L times.
    bias_b = jnp.broadcast_to(pix_ref[D:D + 1, :], (H, P))

    # Fused filter pre-activations: one stacked broadcast-multiply chain and a
    # single wide sin over [(L+1)*H, P]; every coords-row broadcast is emitted
    # exactly once.
    pre = mat_ref[0:HS, 0:1] * pix_ref[0:1, :]
    for d in range(1, D):
        pre = pre + mat_ref[0:HS, d:d + 1] * pix_ref[d:d + 1, :]
    filt_all = jnp.sin(pre)                                   # [(L+1)*H, P] EUP

    h = filt_all[0:H, :]
    for i in range(1, L + 1):                                 # static unroll
        g = filt_all[i * H:(i + 1) * H, :]
        wl_i = mat_ref[HS + (i - 1) * H:HS + i * H, :]        # [H, H]
        lin = (jnp.dot(wl_i, h, preferred_element_type=jnp.float32)
               + vec_ref[:, i - 1:i])                         # + bl column [H,1]
        h = g * lin + bias_b

    wo = mat_ref[HS + L * H:HS + L * H + o_pad, :]            # [O_pad, H]
    bo = vec_ref[0:o_pad, L:L + 1]                            # [O_pad, 1]
    out_ref[...] = jnp.dot(wo, h, preferred_element_type=jnp.float32) + bo


def prepare_hyperzzw(params, coords):
    """One-time layout/packing prep — keep OUT of the per-call forward path."""
    data_dim = int(coords.shape[1])
    K = int(coords.shape[-1])
    P = K * K

    wf, wl, bl = params["wf"], params["wl"], params["bl"]
    wo, bo, bias_p = params["wo"], params["bo"], params["bias_p"]
    num_layers = int(wl.shape[0])
    hidden = int(wl.shape[-1])
    out_ch = int(wo.shape[0])
    o_pad = ((out_ch + 7) // 8) * 8        # sublane-pad output channels
    HS = (num_layers + 1) * hidden

    # Pixel buffer [D+1, P]: coords in their natural NCHW flat form + bias_p.
    pix = jnp.concatenate(
        [coords[0].reshape(data_dim, P), bias_p.reshape(1, P)],
        axis=0).astype(jnp.float32)

    # Packed matrix buffer [R, H]: stacked filter weights (lanes 0..D-1),
    # hidden linears, output linear.  No transposes — the channels-first layout
    # uses the PyTorch [out, in] weight orientation directly.
    rows = HS + num_layers * hidden + o_pad
    mat = jnp.zeros((rows, hidden), jnp.float32)
    mat = mat.at[0:HS, 0:data_dim].set(
        wf.reshape(HS, data_dim).astype(jnp.float32))
    mat = mat.at[HS:HS + num_layers * hidden, :].set(
        wl.reshape(num_layers * hidden, hidden).astype(jnp.float32))
    mat = mat.at[HS + num_layers * hidden:
                 HS + num_layers * hidden + out_ch, :].set(
        wo.astype(jnp.float32))

    # Bias-column buffer [H, L+1]: hidden biases as lane-columns (no in-kernel
    # transpose needed), output bias in the last column.
    vec = jnp.zeros((hidden, num_layers + 1), jnp.float32)
    vec = vec.at[:, 0:num_layers].set(bl.T.astype(jnp.float32))
    vec = vec.at[0:out_ch, num_layers].set(bo.astype(jnp.float32))

    # Pixel tile: single grid step at small P; 128-multiple tiles for large P
    # so the "parallel" axis can shard across v7x's two TensorCores.
    tile_p = P
    if P > 2048:
        for cand in (2048, 1024, 512, 256, 128):
            if P % cand == 0:
                tile_p = cand
                break

    return {
        "arrays": (pix, mat, vec),
        "num_layers": num_layers, "data_dim": data_dim, "hidden": hidden,
        "P": P, "K": K, "out_ch": out_ch, "o_pad": o_pad, "tile_p": tile_p,
        "mat_shape": (rows, hidden), "vec_shape": (hidden, num_layers + 1),
    }


def hyperzzw_apply(prep):
    P, K, TP = prep["P"], prep["K"], prep["tile_p"]
    out_ch, o_pad = prep["out_ch"], prep["o_pad"]
    D = prep["data_dim"]
    kernel = functools.partial(_hyperzzw_kernel, prep["num_layers"], D,
                               prep["hidden"], o_pad)
    out_pad = pl.pallas_call(
        kernel,
        out_shape=jax.ShapeDtypeStruct((o_pad, P), jnp.float32),
        grid_spec=pltpu.PrefetchScalarGridSpec(
            num_scalar_prefetch=0,
            grid=(P // TP,),
            in_specs=[
                pl.BlockSpec((D + 1, TP), lambda i: (0, i)),        # pixels
                pl.BlockSpec(prep["mat_shape"], lambda i: (0, 0)),  # weights
                pl.BlockSpec(prep["vec_shape"], lambda i: (0, 0)),  # bias cols
            ],
            out_specs=pl.BlockSpec((o_pad, TP), lambda i: (0, i)),
        ),
        compiler_params=pltpu.CompilerParams(
            dimension_semantics=("parallel",)),
    )(*prep["arrays"])
    # [O_pad, P] is already channels-first NCHW order: slice real channels,
    # then a free reshape (the slice vanishes when out_ch % 8 == 0).
    return out_pad[:out_ch].reshape(1, out_ch, K, K)


def global_hyperzzw_forward(params, coords, x=None):
    """API-parity wrapper: the PyTorch forward never uses `x`."""
    del x
    return hyperzzw_apply(prepare_hyperzzw(params, coords))


def init_params(key, data_dim, hidden_channels, num_layers, out_channels,
                kernel_size, omega_0, alpha, beta):
    """Deterministic re-implementation of the PyTorch __init__ (synthetic)."""
    n_filters = num_layers + 1
    keys = jax.random.split(key, 2 * n_filters + num_layers + 1)
    kf_gamma = keys[:n_filters]
    kf_w = keys[n_filters:2 * n_filters]
    kl = keys[2 * n_filters:2 * n_filters + num_layers]
    ko = keys[-1]

    # MAGNet filter layers: default nn.Linear init (+-1/sqrt(fan_in)) scaled by
    # 2*pi*omega_0*gamma, gamma ~ Gamma(alpha/(layer+1), beta); bias = 0.
    wf = []
    for layer in range(n_filters):
        a = alpha / (layer + 1)
        gamma = jax.random.gamma(kf_gamma[layer], a,
                                 (hidden_channels, data_dim)) / beta
        bound = 1.0 / math.sqrt(data_dim)
        w = jax.random.uniform(kf_w[layer], (hidden_channels, data_dim),
                               minval=-bound, maxval=bound)
        wf.append(w * 2.0 * np.pi * omega_0 * gamma)
    wf = jnp.stack(wf).astype(jnp.float32)                      # [L+1, H, D]

    # Hidden linears: kaiming_uniform('linear') -> U(+-sqrt(3/fan_in)), bias=1.
    bound_l = math.sqrt(3.0 / hidden_channels)
    wl = jnp.stack([
        jax.random.uniform(kl[i], (hidden_channels, hidden_channels),
                           minval=-bound_l, maxval=bound_l)
        for i in range(num_layers)
    ]).astype(jnp.float32)                                      # [L, H, H]
    bl = jnp.ones((num_layers, hidden_channels), jnp.float32)   # [L, H]

    # Output linear: kaiming_uniform('linear'); learnable bias initialized 0.
    wo = jax.random.uniform(ko, (out_channels, hidden_channels),
                            minval=-bound_l, maxval=bound_l).astype(jnp.float32)
    bo = jnp.zeros((out_channels,), jnp.float32)

    # bias_p parameter: zeros of shape [1, 1, K, K].
    bias_p = jnp.zeros((1, 1, kernel_size, kernel_size), jnp.float32)

    return {"wf": wf, "wl": wl, "bl": bl, "wo": wo, "bo": bo, "bias_p": bias_p}


def reference_forward(params, coords):
    """Plain-JAX reference of the same math (sanity check)."""
    wf, wl, bl = params["wf"], params["wl"], params["bl"]
    wo, bo, bias_p = params["wo"], params["bo"], params["bias_p"]
    data_dim = coords.shape[1]
    K = coords.shape[-1]
    P = K * K
    c = coords[0].reshape(data_dim, P).T                         # [P, D]
    bp = bias_p.reshape(P, 1)
    hi = jax.lax.Precision.HIGHEST

    h = jnp.sin(jnp.dot(c, wf[0].T, precision=hi))
    for i in range(1, wf.shape[0]):
        g = jnp.sin(jnp.dot(c, wf[i].T, precision=hi))
        lin = jnp.dot(h, wl[i - 1].T, precision=hi) + bl[i - 1][None, :]
        h = g * lin + bp
    out = jnp.dot(h, wo.T, precision=hi) + bo[None, :]           # [P, O]
    return out.T.reshape(1, wo.shape[0], K, K)


if __name__ == "__main__":
    # Small, module-consistent shapes.
    data_dim = 2
    hidden_channels = 32
    num_layers = 2
    out_channels = 4
    kernel_size = 16
    omega_0 = 2.0        # constructor default is 2000.0; small here for a
                         # numerically well-conditioned synthetic test
    alpha, beta = 6.0, 1.0

    key = jax.random.PRNGKey(0)
    k_params, k_x = jax.random.split(key)

    params = init_params(k_params, data_dim, hidden_channels, num_layers,
                         out_channels, kernel_size, omega_0, alpha, beta)

    # Coordinate grid in NCHW: [1, data_dim, K, K], values in [-1, 1].
    lin = jnp.linspace(-1.0, 1.0, kernel_size, dtype=jnp.float32)
    yy, xx = jnp.meshgrid(lin, lin, indexing="ij")
    coords = jnp.stack([yy, xx])[None]                           # [1, 2, K, K]

    # `x` is accepted by forward() but unused by the PyTorch module.
    x = jax.random.normal(k_x, (2, 4, 16, 16), dtype=jnp.float32)

    # Layout prep hoisted out of the forward hot path (once per param set /
    # coordinate grid), then the single-kernel forward.
    prep = prepare_hyperzzw(params, coords)
    out = hyperzzw_apply(prep)
    out = jax.block_until_ready(out)

    ref = reference_forward(params, coords)
    assert out.shape == (1, out_channels, kernel_size, kernel_size), out.shape
    assert bool(jnp.all(jnp.isfinite(out)))
    assert bool(jnp.allclose(out, ref, rtol=1e-2, atol=1e-2)), \
        float(jnp.max(jnp.abs(out - ref)))

    print("KERNEL_OK")
</pallas_src>

<mosaic_0001>
module attributes {stable_mosaic.version = 11 : i64} {
  func.func @_hyperzzw_kernel(%arg0: i32, %arg1: memref<3x256xf32, #tpu.memory_space<vmem>>, %arg2: memref<168x32xf32, #tpu.memory_space<vmem>>, %arg3: memref<32x3xf32, #tpu.memory_space<vmem>>, %arg4: memref<8x256xf32, #tpu.memory_space<vmem>>) attributes {dimension_semantics = [#tpu.dimension_semantics<parallel>], iteration_bounds = array<i64: 1>, scalar_prefetch = 0 : i64, scratch_operands = 0 : i64, tpu.core_type = #tpu.core_type<tc>, window_params = [{transform_indices = @transform_0, window_bounds = array<i64: 3, 256>}, {pipeline_mode = #tpu.pipeline_mode<synchronous>, transform_indices = @transform_1, window_bounds = array<i64: 168, 32>}, {pipeline_mode = #tpu.pipeline_mode<synchronous>, transform_indices = @transform_2, window_bounds = array<i64: 32, 3>}, {transform_indices = @transform_3, window_bounds = array<i64: 8, 256>}]} {
    %c2 = arith.constant 2 : index
    %c0 = arith.constant 0 : index
    %0 = vector.load %arg1[%c2, %c0] : memref<3x256xf32, #tpu.memory_space<vmem>>, vector<1x256xf32>
    %1 = vector.shape_cast %0 : vector<1x256xf32> to vector<1x256xf32>
    %2 = vector.broadcast %1 : vector<1x256xf32> to vector<32x256xf32>
    %c0_0 = arith.constant 0 : index
    %c0_1 = arith.constant 0 : index
    %3 = vector.load %arg2[%c0_0, %c0_1] : memref<168x32xf32, #tpu.memory_space<vmem>>, vector<96x1xf32>
    %c0_2 = arith.constant 0 : index
    %c0_3 = arith.constant 0 : index
    %4 = vector.load %arg1[%c0_2, %c0_3] : memref<3x256xf32, #tpu.memory_space<vmem>>, vector<1x256xf32>
    %5 = vector.broadcast %3 : vector<96x1xf32> to vector<96x256xf32>
    %6 = vector.broadcast %4 : vector<1x256xf32> to vector<96x256xf32>
    %7 = arith.mulf %5, %6 : vector<96x256xf32>
    %c0_4 = arith.constant 0 : index
    %c1 = arith.constant 1 : index
    %8 = vector.load %arg2[%c0_4, %c1] : memref<168x32xf32, #tpu.memory_space<vmem>>, vector<96x1xf32>
    %c1_5 = arith.constant 1 : index
    %c0_6 = arith.constant 0 : index
    %9 = vector.load %arg1[%c1_5, %c0_6] : memref<3x256xf32, #tpu.memory_space<vmem>>, vector<1x256xf32>
    %10 = vector.broadcast %8 : vector<96x1xf32> to vector<96x256xf32>
    %11 = vector.broadcast %9 : vector<1x256xf32> to vector<96x256xf32>
    %12 = arith.mulf %10, %11 : vector<96x256xf32>
    %13 = arith.addf %7, %12 : vector<96x256xf32>
    %14 = math.sin %13 : vector<96x256xf32>
    %15 = vector.extract_strided_slice %14 {offsets = [0, 0], sizes = [32, 256], strides = [1, 1]} : vector<96x256xf32> to vector<32x256xf32>
    %16 = vector.extract_strided_slice %14 {offsets = [32, 0], sizes = [32, 256], strides = [1, 1]} : vector<96x256xf32> to vector<32x256xf32>
    %c96 = arith.constant 96 : index
    %c0_7 = arith.constant 0 : index
    %17 = vector.load %arg2[%c96, %c0_7] : memref<168x32xf32, #tpu.memory_space<vmem>>, vector<32x32xf32>
    %cst = arith.constant dense<0.000000e+00> : vector<32x256xf32>
    %18 = tpu.matmul %17, %15, %cst {dimension_numbers = #tpu.dot_dimension_numbers<[1], [0], [0], [1], [0, 0, 1, 1], [], []>} : vector<32x32xf32>, vector<32x256xf32>, vector<32x256xf32> -> vector<32x256xf32>
    %c0_8 = arith.constant 0 : index
    %c0_9 = arith.constant 0 : index
    %19 = vector.load %arg3[%c0_8, %c0_9] : memref<32x3xf32, #tpu.memory_space<vmem>>, vector<32x1xf32>
    %20 = vector.broadcast %19 : vector<32x1xf32> to vector<32x256xf32>
    %21 = arith.addf %18, %20 : vector<32x256xf32>
    %22 = arith.mulf %16, %21 : vector<32x256xf32>
    %23 = arith.addf %22, %2 : vector<32x256xf32>
    %24 = vector.extract_strided_slice %14 {offsets = [64, 0], sizes = [32, 256], strides = [1, 1]} : vector<96x256xf32> to vector<32x256xf32>
    %c128 = arith.constant 128 : index
    %c0_10 = arith.constant 0 : index
    %25 = vector.load %arg2[%c128, %c0_10] : memref<168x32xf32, #tpu.memory_space<vmem>>, vector<32x32xf32>
    %cst_11 = arith.constant dense<0.000000e+00> : vector<32x256xf32>
    %26 = tpu.matmul %25, %23, %cst_11 {dimension_numbers = #tpu.dot_dimension_numbers<[1], [0], [0], [1], [0, 0, 1, 1], [], []>} : vector<32x32xf32>, vector<32x256xf32>, vector<32x256xf32> -> vector<32x256xf32>
    %c0_12 = arith.constant 0 : index
    %c1_13 = arith.constant 1 : index
    %27 = vector.load %arg3[%c0_12, %c1_13] : memref<32x3xf32, #tpu.memory_space<vmem>>, vector<32x1xf32>
    %28 = vector.broadcast %27 : vector<32x1xf32> to vector<32x256xf32>
    %29 = arith.addf %26, %28 : vector<32x256xf32>
    %30 = arith.mulf %24, %29 : vector<32x256xf32>
    %31 = arith.addf %30, %2 : vector<32x256xf32>
    %c160 = arith.constant 160 : index
    %c0_14 = arith.constant 0 : index
    %32 = vector.load %arg2[%c160, %c0_14] : memref<168x32xf32, #tpu.memory_space<vmem>>, vector<8x32xf32>
    %c0_15 = arith.constant 0 : index
    %c2_16 = arith.constant 2 : index
    %33 = vector.load %arg3[%c0_15, %c2_16] : memref<32x3xf32, #tpu.memory_space<vmem>>, vector<8x1xf32>
    %cst_17 = arith.constant dense<0.000000e+00> : vector<8x256xf32>
    %34 = tpu.matmul %32, %31, %cst_17 {dimension_numbers = #tpu.dot_dimension_numbers<[1], [0], [0], [1], [0, 0, 1, 1], [], []>} : vector<8x32xf32>, vector<32x256xf32>, vector<8x256xf32> -> vector<8x256xf32>
    %35 = vector.broadcast %33 : vector<8x1xf32> to vector<8x256xf32>
    %36 = arith.addf %34, %35 : vector<8x256xf32>
    %c0_18 = arith.constant 0 : index
    %c0_19 = arith.constant 0 : index
    %37 = vector.load %arg4[%c0_18, %c0_19] : memref<8x256xf32, #tpu.memory_space<vmem>>, vector<8x256xf32>
    tpu.vector_store %arg4[%c0_18, %c0_19], %36 {strides = array<i32>} : memref<8x256xf32, #tpu.memory_space<vmem>>, vector<8x256xf32>,
    return
  }
  func.func @transform_0(%arg0: i32) -> (i32, i32) {
    %c0_i32 = arith.constant 0 : i32
    %c0_i32_0 = arith.constant 0 : i32
    return %c0_i32, %arg0 : i32, i32
  }
  func.func @transform_1(%arg0: i32) -> (i32, i32) {
    %c0_i32 = arith.constant 0 : i32
    %c0_i32_0 = arith.constant 0 : i32
    %c0_i32_1 = arith.constant 0 : i32
    return %c0_i32, %c0_i32_0 : i32, i32
  }
  func.func @transform_2(%arg0: i32) -> (i32, i32) {
    %c0_i32 = arith.constant 0 : i32
    %c0_i32_0 = arith.constant 0 : i32
    %c0_i32_1 = arith.constant 0 : i32
    return %c0_i32, %c0_i32_0 : i32, i32
  }
  func.func @transform_3(%arg0: i32) -> (i32, i32) {
    %c0_i32 = arith.constant 0 : i32
    %c0_i32_0 = arith.constant 0 : i32
    return %c0_i32, %arg0 : i32, i32
  }
}

</mosaic_0001>

<llo_original>
// kernel: tpu_custom_call.1
$region0: #{tpu_custom_call.1}
  #allocation0 [shape = 'u32[]', space=smem, size = 0x4, offset = 0x4, fixed_abs, tag = 'smem constant byte address 0x4 - core index']
  #allocation1 [shape = 'u32[144,128]{1,0:T(1,128)}', space=vmem, size = 0x12000, scoped, tag = 'internal scratch']
  %s0 = inlined_call_operand.vmem [shape: f32[3,256], index: 0, kind: input, shape index: {}]
  %s1 = inlined_call_operand.vmem [shape: f32[168,32], index: 1, kind: input, shape index: {}]
  %s2 = inlined_call_operand.vmem [shape: f32[32,3], index: 2, kind: input, shape index: {}]
  %s3 = inlined_call_operand.hbm [shape: f32[8,256], index: 3, kind: output, shape index: {}]
  %s4 = sld [smem:[#allocation0]]
  $region22: #{tpu_custom_call.1} parent=0
    _
  %s6 = ssub.s32 1, %s4
  %s7 = scalar_select 0, %s6, %s4
  $region1: #{tpu_custom_call.1} parent=0
    #allocation2 [shape = 'u8[8192]{0}', space=vmem, size = 0x2000, scoped, tag = 'output window, operand 0, single buffered']
    #allocation3 [shape = 's32[1]{0}', space=sflag, size = 0x4, scoped, tag = 'scoped memory for tpu_custom_call.1']
    %8 = vsyncpa [#allocation3], 0
    // Predicated region
    $region2: #{tpu_custom_call.1} parent=1 // pred_check
      _
    $region3: #{tpu_custom_call.1} parent=1 // pred_check_branch
      %10 = sbr.rel (0) target = $region5
    $region4: #{tpu_custom_call.1} parent=1 // pred_region
      _
    $region5: #{tpu_custom_call.1} parent=1 // pred_fallthru
      _
    // Predicated region
    $region6: #{tpu_custom_call.1} parent=1 // pred_check
      _
    $region7: #{tpu_custom_call.1} parent=1 // pred_check_branch
      %12 = sbr.rel (0) target = $region9
    $region8: #{tpu_custom_call.1} parent=1 // pred_region
      _
    $region9: #{tpu_custom_call.1} parent=1 // pred_fallthru
      _
    // Predicated region
    $region10: #{tpu_custom_call.1} parent=1 // pred_check
      _
    $region11: #{tpu_custom_call.1} parent=1 // pred_check_branch
      %14 = sbr.rel (0) target = $region13
    $region12: #{tpu_custom_call.1} parent=1 // pred_region
      _
    $region13: #{tpu_custom_call.1} parent=1 // pred_fallthru
      _
    %s15 = scalar_lea.vmem %s0, 2
    %v16 = vld [vmem:[%s15] ss:$4 sm:$0x3]
    %v18 = vlaneseq
    %v19 = vshrl.u32 %v18, 7
    %v20 = vsub.s32 0, %v19
    %v21 = vrot.slane %v16, %v20
    %v22 = vlaneseq
    %v23 = vshrl.u32 %v22, 7
    %v24 = vsub.s32 1, %v23
    %v25 = vrot.slane %v16, %v24
    %v28 = vld [vmem:[%s1] sm:$0xff]
    %v29 = vld [vmem:[%s1 + $0x8] sm:$0xff]
    %v30 = vld [vmem:[%s1 + $0x10] sm:$0xff]
    %v31 = vld [vmem:[%s1 + $0x18] sm:$0xff]
    %v32 = vld [vmem:[%s1 + $0x20] sm:$0xff]
    %v33 = vld [vmem:[%s1 + $0x28] sm:$0xff]
    %v34 = vld [vmem:[%s1 + $0x30] sm:$0xff]
    %v35 = vld [vmem:[%s1 + $0x38] sm:$0xff]
    %v36 = vld [vmem:[%s1 + $0x40] sm:$0xff]
    %v37 = vld [vmem:[%s1 + $0x48] sm:$0xff]
    %v38 = vld [vmem:[%s1 + $0x50] sm:$0xff]
    %v39 = vld [vmem:[%s1 + $0x58] sm:$0xff]
    %v40 = vld [vmem:[%s0] ss:$4 sm:$0x3]
    %42 = vset.pattern.permute.xlu0 0
    %43 = vperm.xlu0 %42, %v28
    %v44 = vpop.permute.xlu0 %43
    %47 = vset.pattern.permute.xlu0 0
    %48 = vperm.xlu0 %47, %v29
    %v49 = vpop.permute.xlu0 %48
    %52 = vset.pattern.permute.xlu0 0
    %53 = vperm.xlu0 %52, %v30
    %v54 = vpop.permute.xlu0 %53
    %57 = vset.pattern.permute.xlu0 0
    %58 = vperm.xlu0 %57, %v31
    %v59 = vpop.permute.xlu0 %58
    %62 = vset.pattern.permute.xlu0 0
    %63 = vperm.xlu0 %62, %v32
    %v64 = vpop.permute.xlu0 %63
    %67 = vset.pattern.permute.xlu0 0
    %68 = vperm.xlu0 %67, %v33
    %v69 = vpop.permute.xlu0 %68
    %72 = vset.pattern.permute.xlu0 0
    %73 = vperm.xlu0 %72, %v34
    %v74 = vpop.permute.xlu0 %73
    %77 = vset.pattern.permute.xlu0 0
    %78 = vperm.xlu0 %77, %v35
    %v79 = vpop.permute.xlu0 %78
    %82 = vset.pattern.permute.xlu0 0
    %83 = vperm.xlu0 %82, %v36
    %v84 = vpop.permute.xlu0 %83
    %87 = vset.pattern.permute.xlu0 0
    %88 = vperm.xlu0 %87, %v37
    %v89 = vpop.permute.xlu0 %88
    %92 = vset.pattern.permute.xlu0 0
    %93 = vperm.xlu0 %92, %v38
    %v94 = vpop.permute.xlu0 %93
    %97 = vset.pattern.permute.xlu0 0
    %98 = vperm.xlu0 %97, %v39
    %v99 = vpop.permute.xlu0 %98
    %v102 = vlaneseq
    %v103 = vshrl.u32 %v102, 7
    %v104 = vsub.s32 0, %v103
    %v105 = vrot.slane %v40, %v104
    %v106 = vlaneseq
    %v107 = vshrl.u32 %v106, 7
    %v108 = vsub.s32 1, %v107
    %v109 = vrot.slane %v40, %v108
    %v112 = vmul.f32 %v44, %v105
    %v113 = vmul.f32 %v44, %v109
    %v114 = vmul.f32 %v49, %v105
    %v115 = vmul.f32 %v49, %v109
    %v116 = vmul.f32 %v54, %v105
    %v117 = vmul.f32 %v54, %v109
    %v118 = vmul.f32 %v59, %v105
    %v119 = vmul.f32 %v59, %v109
    %v120 = vmul.f32 %v64, %v105
    %v121 = vmul.f32 %v64, %v109
    %v122 = vmul.f32 %v69, %v105
    %v123 = vmul.f32 %v69, %v109
    %v124 = vmul.f32 %v74, %v105
    %v125 = vmul.f32 %v74, %v109
    %v126 = vmul.f32 %v79, %v105
    %v127 = vmul.f32 %v79, %v109
    %v128 = vmul.f32 %v84, %v105
    %v129 = vmul.f32 %v84, %v109
    %v130 = vmul.f32 %v89, %v105
    %v131 = vmul.f32 %v89, %v109
    %v132 = vmul.f32 %v94, %v105
    %v133 = vmul.f32 %v94, %v109
    %v134 = vmul.f32 %v99, %v105
    %v135 = vmul.f32 %v99, %v109
    %s136 = scalar_lea.vmem %s0, 1
    %v137 = vld [vmem:[%s136] ss:$4 sm:$0x3]
    %138 = vset.pattern.permute.xlu0 1
    %139 = vperm.xlu0 %138, %v28
    %v140 = vpop.permute.xlu0 %139
    %142 = vset.pattern.permute.xlu0 1
    %143 = vperm.xlu0 %142, %v29
    %v144 = vpop.permute.xlu0 %143
    %146 = vset.pattern.permute.xlu0 1
    %147 = vperm.xlu0 %146, %v30
    %v148 = vpop.permute.xlu0 %147
    %150 = vset.pattern.permute.xlu0 1
    %151 = vperm.xlu0 %150, %v31
    %v152 = vpop.permute.xlu0 %151
    %154 = vset.pattern.permute.xlu0 1
    %155 = vperm.xlu0 %154, %v32
    %v156 = vpop.permute.xlu0 %155
    %158 = vset.pattern.permute.xlu0 1
    %159 = vperm.xlu0 %158, %v33
    %v160 = vpop.permute.xlu0 %159
    %162 = vset.pattern.permute.xlu0 1
    %163 = vperm.xlu0 %162, %v34
    %v164 = vpop.permute.xlu0 %163
    %166 = vset.pattern.permute.xlu0 1
    %167 = vperm.xlu0 %166, %v35
    %v168 = vpop.permute.xlu0 %167
    %170 = vset.pattern.permute.xlu0 1
    %171 = vperm.xlu0 %170, %v36
    %v172 = vpop.permute.xlu0 %171
    %174 = vset.pattern.permute.xlu0 1
    %175 = vperm.xlu0 %174, %v37
    %v176 = vpop.permute.xlu0 %175
    %178 = vset.pattern.permute.xlu0 1
    %179 = vperm.xlu0 %178, %v38
    %v180 = vpop.permute.xlu0 %179
    %182 = vset.pattern.permute.xlu0 1
    %183 = vperm.xlu0 %182, %v39
    %v184 = vpop.permute.xlu0 %183
    %v187 = vlaneseq
    %v188 = vshrl.u32 %v187, 7
    %v189 = vsub.s32 0, %v188
    %v190 = vrot.slane %v137, %v189
    %v191 = vlaneseq
    %v192 = vshrl.u32 %v191, 7
    %v193 = vsub.s32 1, %v192
    %v194 = vrot.slane %v137, %v193
    %v197 = vmul.f32 %v140, %v190
    %v198 = vmul.f32 %v140, %v194
    %v199 = vmul.f32 %v144, %v190
    %v200 = vmul.f32 %v144, %v194
    %v201 = vmul.f32 %v148, %v190
    %v202 = vmul.f32 %v148, %v194
    %v203 = vmul.f32 %v152, %v190
    %v204 = vmul.f32 %v152, %v194
    %v205 = vmul.f32 %v156, %v190
    %v206 = vmul.f32 %v156, %v194
    %v207 = vmul.f32 %v160, %v190
    %v208 = vmul.f32 %v160, %v194
    %v209 = vmul.f32 %v164, %v190
    %v210 = vmul.f32 %v164, %v194
    %v211 = vmul.f32 %v168, %v190
    %v212 = vmul.f32 %v168, %v194
    %v213 = vmul.f32 %v172, %v190
    %v214 = vmul.f32 %v172, %v194
    %v215 = vmul.f32 %v176, %v190
    %v216 = vmul.f32 %v176, %v194
    %v217 = vmul.f32 %v180, %v190
    %v218 = vmul.f32 %v180, %v194
    %v219 = vmul.f32 %v184, %v190
    %v220 = vmul.f32 %v184, %v194
    %v221 = vadd.f32 %v112, %v197
    %v222 = vadd.f32 %v113, %v198
    %v223 = vadd.f32 %v114, %v199
    %v224 = vadd.f32 %v115, %v200
    %v225 = vadd.f32 %v116, %v201
    %v226 = vadd.f32 %v117, %v202
    %v227 = vadd.f32 %v118, %v203
    %v228 = vadd.f32 %v119, %v204
    %v229 = vadd.f32 %v120, %v205
    %v230 = vadd.f32 %v121, %v206
    %v231 = vadd.f32 %v122, %v207
    %v232 = vadd.f32 %v123, %v208
    %v233 = vadd.f32 %v124, %v209
    %v234 = vadd.f32 %v125, %v210
    %v235 = vadd.f32 %v126, %v211
    %v236 = vadd.f32 %v127, %v212
    %v237 = vadd.f32 %v128, %v213
    %v238 = vadd.f32 %v129, %v214
    %v239 = vadd.f32 %v130, %v215
    %v240 = vadd.f32 %v131, %v216
    %v241 = vadd.f32 %v132, %v217
    %v242 = vadd.f32 %v133, %v218
    %v243 = vadd.f32 %v134, %v219
    %v244 = vadd.f32 %v135, %v220
    %v245 = vand.u32 2147483647, %v221
    %vm246 = vcmp.le.f32.partialorder %v245, 0.7853982
    %vm247 = vcmp.lt.s32.totalorder %v221, 0
    %v248 = vand.u32 %v221, 2139095040
    %v249 = vshrl.u32 %v248, 23
    %v250 = vsub.s32 %v249, 127
    %v251 = vand.u32 2147483647, %v221
    %v252 = vand.u32 %v251, 8388607
    %v253 = vor.u32 %v252, 8388608
    %v254 = vsub.s32 0, %v253
    %v255 = vadd.s32 %v250, 1
    %vm256 = vcmp.gt.s32.totalorder %v255, 0
    %v257 = vsel %vm256, %v255, 0
    %v258 = vshrl.u32 %v257, 5
    %v259 = vand.u32 %v257, 31
    %v260 = vsub.s32 32, %v259
    %v261 = vshrl.u32 683565275, %v260
    %v262 = vshll.u32 683565275, %v259
    %v263 = vshrl.u32 2475754826, %v260
    %v264 = vor.u32 %v262, %v263
    %v265 = vshll.u32 2475754826, %v259
    %v266 = vshrl.u32 2131351028, %v260
    %v267 = vor.u32 %v265, %v266
    %v268 = vshll.u32 2131351028, %v259
    %v269 = vshrl.u32 2102212464, %v260
    %v270 = vor.u32 %v268, %v269
    %v271 = vshll.u32 2102212464, %v259
    %v272 = vshrl.u32 920167782, %v260
    %v273 = vor.u32 %v271, %v272
    %v274 = vshll.u32 920167782, %v259
    %v275 = vshrl.u32 1326507024, %v260
    %v276 = vor.u32 %v274, %v275
    %vm277 = vcmp.lt.s32.totalorder %v258, 1
    %vm278 = vcmp.lt.s32.totalorder %v258, 2
    %vm279 = vcmp.lt.s32.totalorder %v258, 3
    %vm280 = vcmp.lt.s32.totalorder %v258, 4
    %v281 = vsel %vm277, %v261, %v264
    %v282 = vsel %vm280, %v270, 2102212464
    %v283 = vsel %vm279, %v267, %v282
    %v284 = vsel %vm278, %v281, %v283
    %v285 = vsel %vm277, %v264, %v267
    %v286 = vsel %vm280, %v273, 920167782
    %v287 = vsel %vm279, %v270, %v286
    %v288 = vsel %vm278, %v285, %v287
    %v289 = vsel %vm277, %v267, %v270
    %v290 = vsel %vm280, %v276, 1326507024
    %v291 = vsel %vm279, %v273, %v290
    %v292 = vsel %vm278, %v289, %v291
    %v293 = vshll.u32 %v253, 8
    %v294 = vmul.u32.u64.compose %v293, %v292
    %v295 = vextract.low.u32 %v294
    %v296 = vextract.high.u32 %v294
    %v297 = vmul.u32.u64.compose %v293, %v288
    %v298 = vextract.low.u32 %v297
    %v299 = vextract.high.u32 %v297
    %v300 = vmul.u32 %v293, %v284
    %v301 = vadd.s32 %v296, %v298
    %vm302 = vc.u32 %v296, %v298
    %v303 = vadd.s32 %v299, 1
    %v304 = vsel %vm302, %v303, %v299
    %v305 = vadd.s32 %v300, %v304
    %v306 = vadd.s32 %v305, 536870912
    %v307 = vshrl.u32 %v306, 30
    %v308 = vshll.u32 %v307, 30
    %v309 = vsub.s32 %v305, %v308
    %vm310 = vcmp.lt.s32.totalorder %v309, 0
    %v311 = vsub.s32 0, %v309
    %v312 = vsel %vm310, %v311, %v309
    %v313 = vclz %v312
    %v314 = vsub.s32 %v313, 2
    %vm315 = vcmp.gt.s32.totalorder 0, %v314
    %v316 = vsel %vm315, 0, %v314
    %v317 = vsub.s32 32, %v316
    %v318 = vshll.u32 %v309, %v316
    %v319 = vshrl.u32 %v301, %v317
    %v320 = vor.u32 %v318, %v319
    %v321 = vsub.s32 4294967266, %v316
    %v322 = vadd.s32 %v321, 127
    %v323 = vshll.u32 %v322, 23
    %v324 = vor.u32 4788187, %v323
    %v325 = vand.u32 2147483647, %v324
    %v327 = vcvt.s32.f32 %v320
    %v328 = vmul.f32 %v327, %v325
    %v329 = vxor.u32 %v328, 2147483648
    %v330 = vsel %vm247, %v329, %v328
    %v331 = vsub.s32 4, %v307
    %v332 = vsel %vm247, %v331, %v307
    %v333 = vsel %vm246, %v221, %v330
    %v334 = vsel %vm246, 0, %v332
    %v335 = vcosq.f32.pop %v333
    %v336 = vsinq.f32.pop %v333
    %vm337 = vweird.f32 %v221
    %v338 = vadd.s32 %v334, 3
    %v339 = vand.u32 %v338, 3
    %vm340 = vcmp.lt.s32.totalorder %v339, 2
    %vm341 = vcmp.eq.s32.totalorder %v339, 0
    %v342 = vxor.u32 %v336, 2147483648
    %v343 = vsel %vm341, %v335, %v342
    %vm344 = vcmp.eq.s32.totalorder %v339, 2
    %v345 = vxor.u32 %v335, 2147483648
    %v346 = vsel %vm344, %v345, %v336
    %v347 = vsel %vm340, %v343, %v346
    %v348 = vsel %vm337, nan, %v347
    %v349 = vand.u32 2147483647, %v222
    %vm350 = vcmp.le.f32.partialorder %v349, 0.7853982
    %vm351 = vcmp.lt.s32.totalorder %v222, 0
    %v352 = vand.u32 %v222, 2139095040
    %v353 = vshrl.u32 %v352, 23
    %v354 = vsub.s32 %v353, 127
    %v355 = vand.u32 2147483647, %v222
    %v356 = vand.u32 %v355, 8388607
    %v357 = vor.u32 %v356, 8388608
    %v358 = vsub.s32 0, %v357
    %v359 = vadd.s32 %v354, 1
    %vm360 = vcmp.gt.s32.totalorder %v359, 0
    %v361 = vsel %vm360, %v359, 0
    %v362 = vshrl.u32 %v361, 5
    %v363 = vand.u32 %v361, 31
    %v364 = vsub.s32 32, %v363
    %v365 = vshrl.u32 683565275, %v364
    %v366 = vshll.u32 683565275, %v363
    %v367 = vshrl.u32 2475754826, %v364
    %v368 = vor.u32 %v366, %v367
    %v369 = vshll.u32 2475754826, %v363
    %v370 = vshrl.u32 2131351028, %v364
    %v371 = vor.u32 %v369, %v370
    %v372 = vshll.u32 2131351028, %v363
    %v373 = vshrl.u32 2102212464, %v364
    %v374 = vor.u32 %v372, %v373
    %v375 = vshll.u32 2102212464, %v363
    %v376 = vshrl.u32 920167782, %v364
    %v377 = vor.u32 %v375, %v376
    %v378 = vshll.u32 920167782, %v363
    %v379 = vshrl.u32 1326507024, %v364
    %v380 = vor.u32 %v378, %v379
    %vm381 = vcmp.lt.s32.totalorder %v362, 1
    %vm382 = vcmp.lt.s32.totalorder %v362, 2
    %vm383 = vcmp.lt.s32.totalorder %v362, 3
    %vm384 = vcmp.lt.s32.totalorder %v362, 4
    %v385 = vsel %vm381, %v365, %v368
    %v386 = vsel %vm384, %v374, 2102212464
    %v387 = vsel %vm383, %v371, %v386
    %v388 = vsel %vm382, %v385, %v387
    %v389 = vsel %vm381, %v368, %v371
    %v390 = vsel %vm384, %v377, 920167782
    %v391 = vsel %vm383, %v374, %v390
    %v392 = vsel %vm382, %v389, %v391
    %v393 = vsel %vm381, %v371, %v374
    %v394 = vsel %vm384, %v380, 1326507024
    %v395 = vsel %vm383, %v377, %v394
    %v396 = vsel %vm382, %v393, %v395
    %v397 = vshll.u32 %v357, 8
    %v398 = vmul.u32.u64.compose %v397, %v396
    %v399 = vextract.low.u32 %v398
    %v400 = vextract.high.u32 %v398
    %v401 = vmul.u32.u64.compose %v397, %v392
    %v402 = vextract.low.u32 %v401
    %v403 = vextract.high.u32 %v401
    %v404 = vmul.u32 %v397, %v388
    %v405 = vadd.s32 %v400, %v402
    %vm406 = vc.u32 %v400, %v402
    %v407 = vadd.s32 %v403, 1
    %v408 = vsel %vm406, %v407, %v403
    %v409 = vadd.s32 %v404, %v408
    %v410 = vadd.s32 %v409, 536870912
    %v411 = vshrl.u32 %v410, 30
    %v412 = vshll.u32 %v411, 30
    %v413 = vsub.s32 %v409, %v412
    %vm414 = vcmp.lt.s32.totalorder %v413, 0
    %v415 = vsub.s32 0, %v413
    %v416 = vsel %vm414, %v415, %v413
    %v417 = vclz %v416
    %v418 = vsub.s32 %v417, 2
    %vm419 = vcmp.gt.s32.totalorder 0, %v418
    %v420 = vsel %vm419, 0, %v418
    %v421 = vsub.s32 32, %v420
    %v422 = vshll.u32 %v413, %v420
    %v423 = vshrl.u32 %v405, %v421
    %v424 = vor.u32 %v422, %v423
    %v425 = vsub.s32 4294967266, %v420
    %v426 = vadd.s32 %v425, 127
    %v427 = vshll.u32 %v426, 23
    %v428 = vor.u32 4788187, %v427
    %v429 = vand.u32 2147483647, %v428
    %v431 = vcvt.s32.f32 %v424
    %v432 = vmul.f32 %v431, %v429
    %v433 = vxor.u32 %v432, 2147483648
    %v434 = vsel %vm351, %v433, %v432
    %v435 = vsub.s32 4, %v411
    %v436 = vsel %vm351, %v435, %v411
    %v437 = vsel %vm350, %v222, %v434
    %v438 = vsel %vm350, 0, %v436
    %v439 = vcosq.f32.pop %v437
    %v440 = vsinq.f32.pop %v437
    %vm441 = vweird.f32 %v222
    %v442 = vadd.s32 %v438, 3
    %v443 = vand.u32 %v442, 3
    %vm444 = vcmp.lt.s32.totalorder %v443, 2
    %vm445 = vcmp.eq.s32.totalorder %v443, 0
    %v446 = vxor.u32 %v440, 2147483648
    %v447 = vsel %vm445, %v439, %v446
    %vm448 = vcmp.eq.s32.totalorder %v443, 2
    %v449 = vxor.u32 %v439, 2147483648
    %v450 = vsel %vm448, %v449, %v440
    %v451 = vsel %vm444, %v447, %v450
    %v452 = vsel %vm441, nan, %v451
    %v453 = vand.u32 2147483647, %v223
    %vm454 = vcmp.le.f32.partialorder %v453, 0.7853982
    %vm455 = vcmp.lt.s32.totalorder %v223, 0
    %v456 = vand.u32 %v223, 2139095040
    %v457 = vshrl.u32 %v456, 23
    %v458 = vsub.s32 %v457, 127
    %v459 = vand.u32 2147483647, %v223
    %v460 = vand.u32 %v459, 8388607
    %v461 = vor.u32 %v460, 8388608
    %v462 = vsub.s32 0, %v461
    %v463 = vadd.s32 %v458, 1
    %vm464 = vcmp.gt.s32.totalorder %v463, 0
    %v465 = vsel %vm464, %v463, 0
    %v466 = vshrl.u32 %v465, 5
    %v467 = vand.u32 %v465, 31
    %v468 = vsub.s32 32, %v467
    %v469 = vshrl.u32 683565275, %v468
    %v470 = vshll.u32 683565275, %v467
    %v471 = vshrl.u32 2475754826, %v468
    %v472 = vor.u32 %v470, %v471
    %v473 = vshll.u32 2475754826, %v467
    %v474 = vshrl.u32 2131351028, %v468
    %v475 = vor.u32 %v473, %v474
    %v476 = vshll.u32 2131351028, %v467
    %v477 = vshrl.u32 2102212464, %v468
    %v478 = vor.u32 %v476, %v477
    %v479 = vshll.u32 2102212464, %v467
    %v480 = vshrl.u32 920167782, %v468
    %v481 = vor.u32 %v479, %v480
    %v482 = vshll.u32 920167782, %v467
    %v483 = vshrl.u32 1326507024, %v468
    %v484 = vor.u32 %v482, %v483
    %vm485 = vcmp.lt.s32.totalorder %v466, 1
    %vm486 = vcmp.lt.s32.totalorder %v466, 2
    %vm487 = vcmp.lt.s32.totalorder %v466, 3
    %vm488 = vcmp.lt.s32.totalorder %v466, 4
    %v489 = vsel %vm485, %v469, %v472
    %v490 = vsel %vm488, %v478, 2102212464
    %v491 = vsel %vm487, %v475, %v490
    %v492 = vsel %vm486, %v489, %v491
    %v493 = vsel %vm485, %v472, %v475
    %v494 = vsel %vm488, %v481, 920167782
    %v495 = vsel %vm487, %v478, %v494
    %v496 = vsel %vm486, %v493, %v495
    %v497 = vsel %vm485, %v475, %v478
    %v498 = vsel %vm488, %v484, 1326507024
    %v499 = vsel %vm487, %v481, %v498
    %v500 = vsel %vm486, %v497, %v499
    %v501 = vshll.u32 %v461, 8
    %v502 = vmul.u32.u64.compose %v501, %v500
    %v503 = vextract.low.u32 %v502
    %v504 = vextract.high.u32 %v502
    %v505 = vmul.u32.u64.compose %v501, %v496
    %v506 = vextract.low.u32 %v505
    %v507 = vextract.high.u32 %v505
    %v508 = vmul.u32 %v501, %v492
    %v509 = vadd.s32 %v504, %v506
    %vm510 = vc.u32 %v504, %v506
    %v511 = vadd.s32 %v507, 1
    %v512 = vsel %vm510, %v511, %v507
    %v513 = vadd.s32 %v508, %v512
    %v514 = vadd.s32 %v513, 536870912
    %v515 = vshrl.u32 %v514, 30
    %v516 = vshll.u32 %v515, 30
    %v517 = vsub.s32 %v513, %v516
    %vm518 = vcmp.lt.s32.totalorder %v517, 0
    %v519 = vsub.s32 0, %v517
    %v520 = vsel %vm518, %v519, %v517
    %v521 = vclz %v520
    %v522 = vsub.s32 %v521, 2
    %vm523 = vcmp.gt.s32.totalorder 0, %v522
    %v524 = vsel %vm523, 0, %v522
    %v525 = vsub.s32 32, %v524
    %v526 = vshll.u32 %v517, %v524
    %v527 = vshrl.u32 %v509, %v525
    %v528 = vor.u32 %v526, %v527
    %v529 = vsub.s32 4294967266, %v524
    %v530 = vadd.s32 %v529, 127
    %v531 = vshll.u32 %v530, 23
    %v532 = vor.u32 4788187, %v531
    %v533 = vand.u32 2147483647, %v532
    %v535 = vcvt.s32.f32 %v528
    %v536 = vmul.f32 %v535, %v533
    %v537 = vxor.u32 %v536, 2147483648
    %v538 = vsel %vm455, %v537, %v536
    %v539 = vsub.s32 4, %v515
    %v540 = vsel %vm455, %v539, %v515
    %v541 = vsel %vm454, %v223, %v538
    %v542 = vsel %vm454, 0, %v540
    %v543 = vcosq.f32.pop %v541
    %v544 = vsinq.f32.pop %v541
    %vm545 = vweird.f32 %v223
    %v546 = vadd.s32 %v542, 3
    %v547 = vand.u32 %v546, 3
    %vm548 = vcmp.lt.s32.totalorder %v547, 2
    %vm549 = vcmp.eq.s32.totalorder %v547, 0
    %v550 = vxor.u32 %v544, 2147483648
    %v551 = vsel %vm549, %v543, %v550
    %vm552 = vcmp.eq.s32.totalorder %v547, 2
    %v553 = vxor.u32 %v543, 2147483648
    %v554 = vsel %vm552, %v553, %v544
    %v555 = vsel %vm548, %v551, %v554
    %v556 = vsel %vm545, nan, %v555
    %v557 = vand.u32 2147483647, %v224
    %vm558 = vcmp.le.f32.partialorder %v557, 0.7853982
    %vm559 = vcmp.lt.s32.totalorder %v224, 0
    %v560 = vand.u32 %v224, 2139095040
    %v561 = vshrl.u32 %v560, 23
    %v562 = vsub.s32 %v561, 127
    %v563 = vand.u32 2147483647, %v224
    %v564 = vand.u32 %v563, 8388607
    %v565 = vor.u32 %v564, 8388608
    %v566 = vsub.s32 0, %v565
    %v567 = vadd.s32 %v562, 1
    %vm568 = vcmp.gt.s32.totalorder %v567, 0
    %v569 = vsel %vm568, %v567, 0
    %v570 = vshrl.u32 %v569, 5
    %v571 = vand.u32 %v569, 31
    %v572 = vsub.s32 32, %v571
    %v573 = vshrl.u32 683565275, %v572
    %v574 = vshll.u32 683565275, %v571
    %v575 = vshrl.u32 2475754826, %v572
    %v576 = vor.u32 %v574, %v575
    %v577 = vshll.u32 2475754826, %v571
    %v578 = vshrl.u32 2131351028, %v572
    %v579 = vor.u32 %v577, %v578
    %v580 = vshll.u32 2131351028, %v571
    %v581 = vshrl.u32 2102212464, %v572
    %v582 = vor.u32 %v580, %v581
    %v583 = vshll.u32 2102212464, %v571
    %v584 = vshrl.u32 920167782, %v572
    %v585 = vor.u32 %v583, %v584
    %v586 = vshll.u32 920167782, %v571
    %v587 = vshrl.u32 1326507024, %v572
    %v588 = vor.u32 %v586, %v587
    %vm589 = vcmp.lt.s32.totalorder %v570, 1
    %vm590 = vcmp.lt.s32.totalorder %v570, 2
    %vm591 = vcmp.lt.s32.totalorder %v570, 3
    %vm592 = vcmp.lt.s32.totalorder %v570, 4
    %v593 = vsel %vm589, %v573, %v576
    %v594 = vsel %vm592, %v582, 2102212464
    %v595 = vsel %vm591, %v579, %v594
    %v596 = vsel %vm590, %v593, %v595
    %v597 = vsel %vm589, %v576, %v579
    %v598 = vsel %vm592, %v585, 920167782
    %v599 = vsel %vm591, %v582, %v598
    %v600 = vsel %vm590, %v597, %v599
    %v601 = vsel %vm589, %v579, %v582
    %v602 = vsel %vm592, %v588, 1326507024
    %v603 = vsel %vm591, %v585, %v602
    %v604 = vsel %vm590, %v601, %v603
    %v605 = vshll.u32 %v565, 8
    %v606 = vmul.u32.u64.compose %v605, %v604
    %v607 = vextract.low.u32 %v606
    %v608 = vextract.high.u32 %v606
    %v609 = vmul.u32.u64.compose %v605, %v600
    %v610 = vextract.low.u32 %v609
    %v611 = vextract.high.u32 %v609
    %v612 = vmul.u32 %v605, %v596
    %v613 = vadd.s32 %v608, %v610
    %vm614 = vc.u32 %v608, %v610
    %v615 = vadd.s32 %v611, 1
    %v616 = vsel %vm614, %v615, %v611
    %v617 = vadd.s32 %v612, %v616
    %v618 = vadd.s32 %v617, 536870912
    %v619 = vshrl.u32 %v618, 30
    %v620 = vshll.u32 %v619, 30
    %v621 = vsub.s32 %v617, %v620
    %vm622 = vcmp.lt.s32.totalorder %v621, 0
    %v623 = vsub.s32 0, %v621
    %v624 = vsel %vm622, %v623, %v621
    %v625 = vclz %v624
    %v626 = vsub.s32 %v625, 2
    %vm627 = vcmp.gt.s32.totalorder 0, %v626
    %v628 = vsel %vm627, 0, %v626
    %v629 = vsub.s32 32, %v628
    %v630 = vshll.u32 %v621, %v628
    %v631 = vshrl.u32 %v613, %v629
    %v632 = vor.u32 %v630, %v631
    %v633 = vsub.s32 4294967266, %v628
    %v634 = vadd.s32 %v633, 127
    %v635 = vshll.u32 %v634, 23
    %v636 = vor.u32 4788187, %v635
    %v637 = vand.u32 2147483647, %v636
    %v639 = vcvt.s32.f32 %v632
    %v640 = vmul.f32 %v639, %v637
    %v641 = vxor.u32 %v640, 2147483648
    %v642 = vsel %vm559, %v641, %v640
    %v643 = vsub.s32 4, %v619
    %v644 = vsel %vm559, %v643, %v619
    %v645 = vsel %vm558, %v224, %v642
    %v646 = vsel %vm558, 0, %v644
    %v647 = vcosq.f32.pop %v645
    %v648 = vsinq.f32.pop %v645
    %vm649 = vweird.f32 %v224
    %v650 = vadd.s32 %v646, 3
    %v651 = vand.u32 %v650, 3
    %vm652 = vcmp.lt.s32.totalorder %v651, 2
    %vm653 = vcmp.eq.s32.totalorder %v651, 0
    %v654 = vxor.u32 %v648, 2147483648
    %v655 = vsel %vm653, %v647, %v654
    %vm656 = vcmp.eq.s32.totalorder %v651, 2
    %v657 = vxor.u32 %v647, 2147483648
    %v658 = vsel %vm656, %v657, %v648
    %v659 = vsel %vm652, %v655, %v658
    %v660 = vsel %vm649, nan, %v659
    %v661 = vand.u32 2147483647, %v225
    %vm662 = vcmp.le.f32.partialorder %v661, 0.7853982
    %vm663 = vcmp.lt.s32.totalorder %v225, 0
    %v664 = vand.u32 %v225, 2139095040
    %v665 = vshrl.u32 %v664, 23
    %v666 = vsub.s32 %v665, 127
    %v667 = vand.u32 2147483647, %v225
    %v668 = vand.u32 %v667, 8388607
    %v669 = vor.u32 %v668, 8388608
    %v670 = vsub.s32 0, %v669
    %v671 = vadd.s32 %v666, 1
    %vm672 = vcmp.gt.s32.totalorder %v671, 0
    %v673 = vsel %vm672, %v671, 0
    %v674 = vshrl.u32 %v673, 5
    %v675 = vand.u32 %v673, 31
    %v676 = vsub.s32 32, %v675
    %v677 = vshrl.u32 683565275, %v676
    %v678 = vshll.u32 683565275, %v675
    %v679 = vshrl.u32 2475754826, %v676
    %v680 = vor.u32 %v678, %v679
    %v681 = vshll.u32 2475754826, %v675
    %v682 = vshrl.u32 2131351028, %v676
    %v683 = vor.u32 %v681, %v682
    %v684 = vshll.u32 2131351028, %v675
    %v685 = vshrl.u32 2102212464, %v676
    %v686 = vor.u32 %v684, %v685
    %v687 = vshll.u32 2102212464, %v675
    %v688 = vshrl.u32 920167782, %v676
    %v689 = vor.u32 %v687, %v688
    %v690 = vshll.u32 920167782, %v675
    %v691 = vshrl.u32 1326507024, %v676
    %v692 = vor.u32 %v690, %v691
    %vm693 = vcmp.lt.s32.totalorder %v674, 1
    %vm694 = vcmp.lt.s32.totalorder %v674, 2
    %vm695 = vcmp.lt.s32.totalorder %v674, 3
    %vm696 = vcmp.lt.s32.totalorder %v674, 4
    %v697 = vsel %vm693, %v677, %v680
    %v698 = vsel %vm696, %v686, 2102212464
    %v699 = vsel %vm695, %v683, %v698
    %v700 = vsel %vm694, %v697, %v699
    %v701 = vsel %vm693, %v680, %v683
    %v702 = vsel %vm696, %v689, 920167782
    %v703 = vsel %vm695, %v686, %v702
    %v704 = vsel %vm694, %v701, %v703
    %v705 = vsel %vm693, %v683, %v686
    %v706 = vsel %vm696, %v692, 1326507024
    %v707 = vsel %vm695, %v689, %v706
    %v708 = vsel %vm694, %v705, %v707
    %v709 = vshll.u32 %v669, 8
    %v710 = vmul.u32.u64.compose %v709, %v708
    %v711 = vextract.low.u32 %v710
    %v712 = vextract.high.u32 %v710
    %v713 = vmul.u32.u64.compose %v709, %v704
    %v714 = vextract.low.u32 %v713
    %v715 = vextract.high.u32 %v713
    %v716 = vmul.u32 %v709, %v700
    %v717 = vadd.s32 %v712, %v714
    %vm718 = vc.u32 %v712, %v714
    %v719 = vadd.s32 %v715, 1
    %v720 = vsel %vm718, %v719, %v715
    %v721 = vadd.s32 %v716, %v720
    %v722 = vadd.s32 %v721, 536870912
    %v723 = vshrl.u32 %v722, 30
    %v724 = vshll.u32 %v723, 30
    %v725 = vsub.s32 %v721, %v724
    %vm726 = vcmp.lt.s32.totalorder %v725, 0
    %v727 = vsub.s32 0, %v725
    %v728 = vsel %vm726, %v727, %v725
    %v729 = vclz %v728
    %v730 = vsub.s32 %v729, 2
    %vm731 = vcmp.gt.s32.totalorder 0, %v730
    %v732 = vsel %vm731, 0, %v730
    %v733 = vsub.s32 32, %v732
    %v734 = vshll.u32 %v725, %v732
    %v735 = vshrl.u32 %v717, %v733
    %v736 = vor.u32 %v734, %v735
    %v737 = vsub.s32 4294967266, %v732
    %v738 = vadd.s32 %v737, 127
    %v739 = vshll.u32 %v738, 23
    %v740 = vor.u32 4788187, %v739
    %v741 = vand.u32 2147483647, %v740
    %v743 = vcvt.s32.f32 %v736
    %v744 = vmul.f32 %v743, %v741
    %v745 = vxor.u32 %v744, 2147483648
    %v746 = vsel %vm663, %v745, %v744
    %v747 = vsub.s32 4, %v723
    %v748 = vsel %vm663, %v747, %v723
    %v749 = vsel %vm662, %v225, %v746
    %v750 = vsel %vm662, 0, %v748
    %v751 = vcosq.f32.pop %v749
    %v752 = vsinq.f32.pop %v749
    %vm753 = vweird.f32 %v225
    %v754 = vadd.s32 %v750, 3
    %v755 = vand.u32 %v754, 3
    %vm756 = vcmp.lt.s32.totalorder %v755, 2
    %vm757 = vcmp.eq.s32.totalorder %v755, 0
    %v758 = vxor.u32 %v752, 2147483648
    %v759 = vsel %vm757, %v751, %v758
    %vm760 = vcmp.eq.s32.totalorder %v755, 2
    %v761 = vxor.u32 %v751, 2147483648
    %v762 = vsel %vm760, %v761, %v752
    %v763 = vsel %vm756, %v759, %v762
    %v764 = vsel %vm753, nan, %v763
    %v765 = vand.u32 2147483647, %v226
    %vm766 = vcmp.le.f32.partialorder %v765, 0.7853982
    %vm767 = vcmp.lt.s32.totalorder %v226, 0
    %v768 = vand.u32 %v226, 2139095040
    %v769 = vshrl.u32 %v768, 23
    %v770 = vsub.s32 %v769, 127
    %v771 = vand.u32 2147483647, %v226
    %v772 = vand.u32 %v771, 8388607
    %v773 = vor.u32 %v772, 8388608
    %v774 = vsub.s32 0, %v773
    %v775 = vadd.s32 %v770, 1
    %vm776 = vcmp.gt.s32.totalorder %v775, 0
    %v777 = vsel %vm776, %v775, 0
    %v778 = vshrl.u32 %v777, 5
    %v779 = vand.u32 %v777, 31
    %v780 = vsub.s32 32, %v779
    %v781 = vshrl.u32 683565275, %v780
    %v782 = vshll.u32 683565275, %v779
    %v783 = vshrl.u32 2475754826, %v780
    %v784 = vor.u32 %v782, %v783
    %v785 = vshll.u32 2475754826, %v779
    %v786 = vshrl.u32 2131351028, %v780
    %v787 = vor.u32 %v785, %v786
    %v788 = vshll.u32 2131351028, %v779
    %v789 = vshrl.u32 2102212464, %v780
    %v790 = vor.u32 %v788, %v789
    %v791 = vshll.u32 2102212464, %v779
    %v792 = vshrl.u32 920167782, %v780
    %v793 = vor.u32 %v791, %v792
    %v794 = vshll.u32 920167782, %v779
    %v795 = vshrl.u32 1326507024, %v780
    %v796 = vor.u32 %v794, %v795
    %vm797 = vcmp.lt.s32.totalorder %v778, 1
    %vm798 = vcmp.lt.s32.totalorder %v778, 2
    %vm799 = vcmp.lt.s32.totalorder %v778, 3
    %vm800 = vcmp.lt.s32.totalorder %v778, 4
    %v801 = vsel %vm797, %v781, %v784
    %v802 = vsel %vm800, %v790, 2102212464
    %v803 = vsel %vm799, %v787, %v802
    %v804 = vsel %vm798, %v801, %v803
    %v805 = vsel %vm797, %v784, %v787
    %v806 = vsel %vm800, %v793, 920167782
    %v807 = vsel %vm799, %v790, %v806
    %v808 = vsel %vm798, %v805, %v807
    %v809 = vsel %vm797, %v787, %v790
    %v810 = vsel %vm800, %v796, 1326507024
    %v811 = vsel %vm799, %v793, %v810
    %v812 = vsel %vm798, %v809, %v811
    %v813 = vshll.u32 %v773, 8
    %v814 = vmul.u32.u64.compose %v813, %v812
    %v815 = vextract.low.u32 %v814
    %v816 = vextract.high.u32 %v814
    %v817 = vmul.u32.u64.compose %v813, %v808
    %v818 = vextract.low.u32 %v817
    %v819 = vextract.high.u32 %v817
    %v820 = vmul.u32 %v813, %v804
    %v821 = vadd.s32 %v816, %v818
    %vm822 = vc.u32 %v816, %v818
    %v823 = vadd.s32 %v819, 1
    %v824 = vsel %vm822, %v823, %v819
    %v825 = vadd.s32 %v820, %v824
    %v826 = vadd.s32 %v825, 536870912
    %v827 = vshrl.u32 %v826, 30
    %v828 = vshll.u32 %v827, 30
    %v829 = vsub.s32 %v825, %v828
    %vm830 = vcmp.lt.s32.totalorder %v829, 0
    %v831 = vsub.s32 0, %v829
    %v832 = vsel %vm830, %v831, %v829
    %v833 = vclz %v832
    %v834 = vsub.s32 %v833, 2
    %vm835 = vcmp.gt.s32.totalorder 0, %v834
    %v836 = vsel %vm835, 0, %v834
    %v837 = vsub.s32 32, %v836
    %v838 = vshll.u32 %v829, %v836
    %v839 = vshrl.u32 %v821, %v837
    %v840 = vor.u32 %v838, %v839
    %v841 = vsub.s32 4294967266, %v836
    %v842 = vadd.s32 %v841, 127
    %v843 = vshll.u32 %v842, 23
    %v844 = vor.u32 4788187, %v843
    %v845 = vand.u32 2147483647, %v844
    %v847 = vcvt.s32.f32 %v840
    %v848 = vmul.f32 %v847, %v845
    %v849 = vxor.u32 %v848, 2147483648
    %v850 = vsel %vm767, %v849, %v848
    %v851 = vsub.s32 4, %v827
    %v852 = vsel %vm767, %v851, %v827
    %v853 = vsel %vm766, %v226, %v850
    %v854 = vsel %vm766, 0, %v852
    %v855 = vcosq.f32.pop %v853
    %v856 = vsinq.f32.pop %v853
    %vm857 = vweird.f32 %v226
    %v858 = vadd.s32 %v854, 3
    %v859 = vand.u32 %v858, 3
    %vm860 = vcmp.lt.s32.totalorder %v859, 2
    %vm861 = vcmp.eq.s32.totalorder %v859, 0
    %v862 = vxor.u32 %v856, 2147483648
    %v863 = vsel %vm861, %v855, %v862
    %vm864 = vcmp.eq.s32.totalorder %v859, 2
    %v865 = vxor.u32 %v855, 2147483648
    %v866 = vsel %vm864, %v865, %v856
    %v867 = vsel %vm860, %v863, %v866
    %v868 = vsel %vm857, nan, %v867
    %v869 = vand.u32 2147483647, %v227
    %vm870 = vcmp.le.f32.partialorder %v869, 0.7853982
    %vm871 = vcmp.lt.s32.totalorder %v227, 0
    %v872 = vand.u32 %v227, 2139095040
    %v873 = vshrl.u32 %v872, 23
    %v874 = vsub.s32 %v873, 127
    %v875 = vand.u32 2147483647, %v227
    %v876 = vand.u32 %v875, 8388607
    %v877 = vor.u32 %v876, 8388608
    %v878 = vsub.s32 0, %v877
    %v879 = vadd.s32 %v874, 1
    %vm880 = vcmp.gt.s32.totalorder %v879, 0
    %v881 = vsel %vm880, %v879, 0
    %v882 = vshrl.u32 %v881, 5
    %v883 = vand.u32 %v881, 31
    %v884 = vsub.s32 32, %v883
    %v885 = vshrl.u32 683565275, %v884
    %v886 = vshll.u32 683565275, %v883
    %v887 = vshrl.u32 2475754826, %v884
    %v888 = vor.u32 %v886, %v887
    %v889 = vshll.u32 2475754826, %v883
    %v890 = vshrl.u32 2131351028, %v884
    %v891 = vor.u32 %v889, %v890
    %v892 = vshll.u32 2131351028, %v883
    %v893 = vshrl.u32 2102212464, %v884
    %v894 = vor.u32 %v892, %v893
    %v895 = vshll.u32 2102212464, %v883
    %v896 = vshrl.u32 920167782, %v884
    %v897 = vor.u32 %v895, %v896
    %v898 = vshll.u32 920167782, %v883
    %v899 = vshrl.u32 1326507024, %v884
    %v900 = vor.u32 %v898, %v899
    %vm901 = vcmp.lt.s32.totalorder %v882, 1
    %vm902 = vcmp.lt.s32.totalorder %v882, 2
    %vm903 = vcmp.lt.s32.totalorder %v882, 3
    %vm904 = vcmp.lt.s32.totalorder %v882, 4
    %v905 = vsel %vm901, %v885, %v888
    %v906 = vsel %vm904, %v894, 2102212464
    %v907 = vsel %vm903, %v891, %v906
    %v908 = vsel %vm902, %v905, %v907
    %v909 = vsel %vm901, %v888, %v891
    %v910 = vsel %vm904, %v897, 920167782
    %v911 = vsel %vm903, %v894, %v910
    %v912 = vsel %vm902, %v909, %v911
    %v913 = vsel %vm901, %v891, %v894
    %v914 = vsel %vm904, %v900, 1326507024
    %v915 = vsel %vm903, %v897, %v914
    %v916 = vsel %vm902, %v913, %v915
    %v917 = vshll.u32 %v877, 8
    %v918 = vmul.u32.u64.compose %v917, %v916
    %v919 = vextract.low.u32 %v918
    %v920 = vextract.high.u32 %v918
    %v921 = vmul.u32.u64.compose %v917, %v912
    %v922 = vextract.low.u32 %v921
    %v923 = vextract.high.u32 %v921
    %v924 = vmul.u32 %v917, %v908
    %v925 = vadd.s32 %v920, %v922
    %vm926 = vc.u32 %v920, %v922
    %v927 = vadd.s32 %v923, 1
    %v928 = vsel %vm926, %v927, %v923
    %v929 = vadd.s32 %v924, %v928
    %v930 = vadd.s32 %v929, 536870912
    %v931 = vshrl.u32 %v930, 30
    %v932 = vshll.u32 %v931, 30
    %v933 = vsub.s32 %v929, %v932
    %vm934 = vcmp.lt.s32.totalorder %v933, 0
    %v935 = vsub.s32 0, %v933
    %v936 = vsel %vm934, %v935, %v933
    %v937 = vclz %v936
    %v938 = vsub.s32 %v937, 2
    %vm939 = vcmp.gt.s32.totalorder 0, %v938
    %v940 = vsel %vm939, 0, %v938
    %v941 = vsub.s32 32, %v940
    %v942 = vshll.u32 %v933, %v940
    %v943 = vshrl.u32 %v925, %v941
    %v944 = vor.u32 %v942, %v943
    %v945 = vsub.s32 4294967266, %v940
    %v946 = vadd.s32 %v945, 127
    %v947 = vshll.u32 %v946, 23
    %v948 = vor.u32 4788187, %v947
    %v949 = vand.u32 2147483647, %v948
    %v951 = vcvt.s32.f32 %v944
    %v952 = vmul.f32 %v951, %v949
    %v953 = vxor.u32 %v952, 2147483648
    %v954 = vsel %vm871, %v953, %v952
    %v955 = vsub.s32 4, %v931
    %v956 = vsel %vm871, %v955, %v931
    %v957 = vsel %vm870, %v227, %v954
    %v958 = vsel %vm870, 0, %v956
    %v959 = vcosq.f32.pop %v957
    %v960 = vsinq.f32.pop %v957
    %vm961 = vweird.f32 %v227
    %v962 = vadd.s32 %v958, 3
    %v963 = vand.u32 %v962, 3
    %vm964 = vcmp.lt.s32.totalorder %v963, 2
    %vm965 = vcmp.eq.s32.totalorder %v963, 0
    %v966 = vxor.u32 %v960, 2147483648
    %v967 = vsel %vm965, %v959, %v966
    %vm968 = vcmp.eq.s32.totalorder %v963, 2
    %v969 = vxor.u32 %v959, 2147483648
    %v970 = vsel %vm968, %v969, %v960
    %v971 = vsel %vm964, %v967, %v970
    %v972 = vsel %vm961, nan, %v971
    %v973 = vand.u32 2147483647, %v228
    %vm974 = vcmp.le.f32.partialorder %v973, 0.7853982
    %vm975 = vcmp.lt.s32.totalorder %v228, 0
    %v976 = vand.u32 %v228, 2139095040
    %v977 = vshrl.u32 %v976, 23
    %v978 = vsub.s32 %v977, 127
    %v979 = vand.u32 2147483647, %v228
    %v980 = vand.u32 %v979, 8388607
    %v981 = vor.u32 %v980, 8388608
    %v982 = vsub.s32 0, %v981
    %v983 = vadd.s32 %v978, 1
    %vm984 = vcmp.gt.s32.totalorder %v983, 0
    %v985 = vsel %vm984, %v983, 0
    %v986 = vshrl.u32 %v985, 5
    %v987 = vand.u32 %v985, 31
    %v988 = vsub.s32 32, %v987
    %v989 = vshrl.u32 683565275, %v988
    %v990 = vshll.u32 683565275, %v987
    %v991 = vshrl.u32 2475754826, %v988
    %v992 = vor.u32 %v990, %v991
    %v993 = vshll.u32 2475754826, %v987
    %v994 = vshrl.u32 2131351028, %v988
    %v995 = vor.u32 %v993, %v994
    %v996 = vshll.u32 2131351028, %v987
    %v997 = vshrl.u32 2102212464, %v988
    %v998 = vor.u32 %v996, %v997
    %v999 = vshll.u32 2102212464, %v987
    %v1000 = vshrl.u32 920167782, %v988
    %v1001 = vor.u32 %v999, %v1000
    %v1002 = vshll.u32 920167782, %v987
    %v1003 = vshrl.u32 1326507024, %v988
    %v1004 = vor.u32 %v1002, %v1003
    %vm1005 = vcmp.lt.s32.totalorder %v986, 1
    %vm1006 = vcmp.lt.s32.totalorder %v986, 2
    %vm1007 = vcmp.lt.s32.totalorder %v986, 3
    %vm1008 = vcmp.lt.s32.totalorder %v986, 4
    %v1009 = vsel %vm1005, %v989, %v992
    %v1010 = vsel %vm1008, %v998, 2102212464
    %v1011 = vsel %vm1007, %v995, %v1010
    %v1012 = vsel %vm1006, %v1009, %v1011
    %v1013 = vsel %vm1005, %v992, %v995
    %v1014 = vsel %vm1008, %v1001, 920167782
    %v1015 = vsel %vm1007, %v998, %v1014
    %v1016 = vsel %vm1006, %v1013, %v1015
    %v1017 = vsel %vm1005, %v995, %v998
    %v1018 = vsel %vm1008, %v1004, 1326507024
    %v1019 = vsel %vm1007, %v1001, %v1018
    %v1020 = vsel %vm1006, %v1017, %v1019
    %v1021 = vshll.u32 %v981, 8
    %v1022 = vmul.u32.u64.compose %v1021, %v1020
    %v1023 = vextract.low.u32 %v1022
    %v1024 = vextract.high.u32 %v1022
    %v1025 = vmul.u32.u64.compose %v1021, %v1016
    %v1026 = vextract.low.u32 %v1025
    %v1027 = vextract.high.u32 %v1025
    %v1028 = vmul.u32 %v1021, %v1012
    %v1029 = vadd.s32 %v1024, %v1026
    %vm1030 = vc.u32 %v1024, %v1026
    %v1031 = vadd.s32 %v1027, 1
    %v1032 = vsel %vm1030, %v1031, %v1027
    %v1033 = vadd.s32 %v1028, %v1032
    %v1034 = vadd.s32 %v1033, 536870912
    %v1035 = vshrl.u32 %v1034, 30
    %v1036 = vshll.u32 %v1035, 30
    %v1037 = vsub.s32 %v1033, %v1036
    %vm1038 = vcmp.lt.s32.totalorder %v1037, 0
    %v1039 = vsub.s32 0, %v1037
    %v1040 = vsel %vm1038, %v1039, %v1037
    %v1041 = vclz %v1040
    %v1042 = vsub.s32 %v1041, 2
    %vm1043 = vcmp.gt.s32.totalorder 0, %v1042
    %v1044 = vsel %vm1043, 0, %v1042
    %v1045 = vsub.s32 32, %v1044
    %v1046 = vshll.u32 %v1037, %v1044
    %v1047 = vshrl.u32 %v1029, %v1045
    %v1048 = vor.u32 %v1046, %v1047
    %v1049 = vsub.s32 4294967266, %v1044
    %v1050 = vadd.s32 %v1049, 127
    %v1051 = vshll.u32 %v1050, 23
    %v1052 = vor.u32 4788187, %v1051
    %v1053 = vand.u32 2147483647, %v1052
    %v1055 = vcvt.s32.f32 %v1048
    %v1056 = vmul.f32 %v1055, %v1053
    %v1057 = vxor.u32 %v1056, 2147483648
    %v1058 = vsel %vm975, %v1057, %v1056
    %v1059 = vsub.s32 4, %v1035
    %v1060 = vsel %vm975, %v1059, %v1035
    %v1061 = vsel %vm974, %v228, %v1058
    %v1062 = vsel %vm974, 0, %v1060
    %v1063 = vcosq.f32.pop %v1061
    %v1064 = vsinq.f32.pop %v1061
    %vm1065 = vweird.f32 %v228
    %v1066 = vadd.s32 %v1062, 3
    %v1067 = vand.u32 %v1066, 3
    %vm1068 = vcmp.lt.s32.totalorder %v1067, 2
    %vm1069 = vcmp.eq.s32.totalorder %v1067, 0
    %v1070 = vxor.u32 %v1064, 2147483648
    %v1071 = vsel %vm1069, %v1063, %v1070
    %vm1072 = vcmp.eq.s32.totalorder %v1067, 2
    %v1073 = vxor.u32 %v1063, 2147483648
    %v1074 = vsel %vm1072, %v1073, %v1064
    %v1075 = vsel %vm1068, %v1071, %v1074
    %v1076 = vsel %vm1065, nan, %v1075
    %v1077 = vand.u32 2147483647, %v229
    %vm1078 = vcmp.le.f32.partialorder %v1077, 0.7853982
    %vm1079 = vcmp.lt.s32.totalorder %v229, 0
    %v1080 = vand.u32 %v229, 2139095040
    %v1081 = vshrl.u32 %v1080, 23
    %v1082 = vsub.s32 %v1081, 127
    %v1083 = vand.u32 2147483647, %v229
    %v1084 = vand.u32 %v1083, 8388607
    %v1085 = vor.u32 %v1084, 8388608
    %v1086 = vsub.s32 0, %v1085
    %v1087 = vadd.s32 %v1082, 1
    %vm1088 = vcmp.gt.s32.totalorder %v1087, 0
    %v1089 = vsel %vm1088, %v1087, 0
    %v1090 = vshrl.u32 %v1089, 5
    %v1091 = vand.u32 %v1089, 31
    %v1092 = vsub.s32 32, %v1091
    %v1093 = vshrl.u32 683565275, %v1092
    %v1094 = vshll.u32 683565275, %v1091
    %v1095 = vshrl.u32 2475754826, %v1092
    %v1096 = vor.u32 %v1094, %v1095
    %v1097 = vshll.u32 2475754826, %v1091
    %v1098 = vshrl.u32 2131351028, %v1092
    %v1099 = vor.u32 %v1097, %v1098
    %v1100 = vshll.u32 2131351028, %v1091
    %v1101 = vshrl.u32 2102212464, %v1092
    %v1102 = vor.u32 %v1100, %v1101
    %v1103 = vshll.u32 2102212464, %v1091
    %v1104 = vshrl.u32 920167782, %v1092
    %v1105 = vor.u32 %v1103, %v1104
    %v1106 = vshll.u32 920167782, %v1091
    %v1107 = vshrl.u32 1326507024, %v1092
    %v1108 = vor.u32 %v1106, %v1107
    %vm1109 = vcmp.lt.s32.totalorder %v1090, 1
    %vm1110 = vcmp.lt.s32.totalorder %v1090, 2
    %vm1111 = vcmp.lt.s32.totalorder %v1090, 3
    %vm1112 = vcmp.lt.s32.totalorder %v1090, 4
    %v1113 = vsel %vm1109, %v1093, %v1096
    %v1114 = vsel %vm1112, %v1102, 2102212464
    %v1115 = vsel %vm1111, %v1099, %v1114
    %v1116 = vsel %vm1110, %v1113, %v1115
    %v1117 = vsel %vm1109, %v1096, %v1099
    %v1118 = vsel %vm1112, %v1105, 920167782
    %v1119 = vsel %vm1111, %v1102, %v1118
    %v1120 = vsel %vm1110, %v1117, %v1119
    %v1121 = vsel %vm1109, %v1099, %v1102
    %v1122 = vsel %vm1112, %v1108, 1326507024
    %v1123 = vsel %vm1111, %v1105, %v1122
    %v1124 = vsel %vm1110, %v1121, %v1123
    %v1125 = vshll.u32 %v1085, 8
    %v1126 = vmul.u32.u64.compose %v1125, %v1124
    %v1127 = vextract.low.u32 %v1126
    %v1128 = vextract.high.u32 %v1126
    %v1129 = vmul.u32.u64.compose %v1125, %v1120
    %v1130 = vextract.low.u32 %v1129
    %v1131 = vextract.high.u32 %v1129
    %v1132 = vmul.u32 %v1125, %v1116
    %v1133 = vadd.s32 %v1128, %v1130
    %vm1134 = vc.u32 %v1128, %v1130
    %v1135 = vadd.s32 %v1131, 1
    %v1136 = vsel %vm1134, %v1135, %v1131
    %v1137 = vadd.s32 %v1132, %v1136
    %v1138 = vadd.s32 %v1137, 536870912
    %v1139 = vshrl.u32 %v1138, 30
    %v1140 = vshll.u32 %v1139, 30
    %v1141 = vsub.s32 %v1137, %v1140
    %vm1142 = vcmp.lt.s32.totalorder %v1141, 0
    %v1143 = vsub.s32 0, %v1141
    %v1144 = vsel %vm1142, %v1143, %v1141
    %v1145 = vclz %v1144
    %v1146 = vsub.s32 %v1145, 2
    %vm1147 = vcmp.gt.s32.totalorder 0, %v1146
    %v1148 = vsel %vm1147, 0, %v1146
    %v1149 = vsub.s32 32, %v1148
    %v1150 = vshll.u32 %v1141, %v1148
    %v1151 = vshrl.u32 %v1133, %v1149
    %v1152 = vor.u32 %v1150, %v1151
    %v1153 = vsub.s32 4294967266, %v1148
    %v1154 = vadd.s32 %v1153, 127
    %v1155 = vshll.u32 %v1154, 23
    %v1156 = vor.u32 4788187, %v1155
    %v1157 = vand.u32 2147483647, %v1156
    %v1159 = vcvt.s32.f32 %v1152
    %v1160 = vmul.f32 %v1159, %v1157
    %v1161 = vxor.u32 %v1160, 2147483648
    %v1162 = vsel %vm1079, %v1161, %v1160
    %v1163 = vsub.s32 4, %v1139
    %v1164 = vsel %vm1079, %v1163, %v1139
    %v1165 = vsel %vm1078, %v229, %v1162
    %v1166 = vsel %vm1078, 0, %v1164
    %v1167 = vcosq.f32.pop %v1165
    %v1168 = vsinq.f32.pop %v1165
    %vm1169 = vweird.f32 %v229
    %v1170 = vadd.s32 %v1166, 3
    %v1171 = vand.u32 %v1170, 3
    %vm1172 = vcmp.lt.s32.totalorder %v1171, 2
    %vm1173 = vcmp.eq.s32.totalorder %v1171, 0
    %v1174 = vxor.u32 %v1168, 2147483648
    %v1175 = vsel %vm1173, %v1167, %v1174
    %vm1176 = vcmp.eq.s32.totalorder %v1171, 2
    %v1177 = vxor.u32 %v1167, 2147483648
    %v1178 = vsel %vm1176, %v1177, %v1168
    %v1179 = vsel %vm1172, %v1175, %v1178
    %v1180 = vsel %vm1169, nan, %v1179
    %v1181 = vand.u32 2147483647, %v230
    %vm1182 = vcmp.le.f32.partialorder %v1181, 0.7853982
    %vm1183 = vcmp.lt.s32.totalorder %v230, 0
    %v1184 = vand.u32 %v230, 2139095040
    %v1185 = vshrl.u32 %v1184, 23
    %v1186 = vsub.s32 %v1185, 127
    %v1187 = vand.u32 2147483647, %v230
    %v1188 = vand.u32 %v1187, 8388607
    %v1189 = vor.u32 %v1188, 8388608
    %v1190 = vsub.s32 0, %v1189
    %v1191 = vadd.s32 %v1186, 1
    %vm1192 = vcmp.gt.s32.totalorder %v1191, 0
    %v1193 = vsel %vm1192, %v1191, 0
    %v1194 = vshrl.u32 %v1193, 5
    %v1195 = vand.u32 %v1193, 31
    %v1196 = vsub.s32 32, %v1195
    %v1197 = vshrl.u32 683565275, %v1196
    %v1198 = vshll.u32 683565275, %v1195
    %v1199 = vshrl.u32 2475754826, %v1196
    %v1200 = vor.u32 %v1198, %v1199
    %v1201 = vshll.u32 2475754826, %v1195
    %v1202 = vshrl.u32 2131351028, %v1196
    %v1203 = vor.u32 %v1201, %v1202
    %v1204 = vshll.u32 2131351028, %v1195
    %v1205 = vshrl.u32 2102212464, %v1196
    %v1206 = vor.u32 %v1204, %v1205
    %v1207 = vshll.u32 2102212464, %v1195
    %v1208 = vshrl.u32 920167782, %v1196
    %v1209 = vor.u32 %v1207, %v1208
    %v1210 = vshll.u32 920167782, %v1195
    %v1211 = vshrl.u32 1326507024, %v1196
    %v1212 = vor.u32 %v1210, %v1211
    %vm1213 = vcmp.lt.s32.totalorder %v1194, 1
    %vm1214 = vcmp.lt.s32.totalorder %v1194, 2
    %vm1215 = vcmp.lt.s32.totalorder %v1194, 3
    %vm1216 = vcmp.lt.s32.totalorder %v1194, 4
    %v1217 = vsel %vm1213, %v1197, %v1200
    %v1218 = vsel %vm1216, %v1206, 2102212464
    %v1219 = vsel %vm1215, %v1203, %v1218
    %v1220 = vsel %vm1214, %v1217, %v1219
    %v1221 = vsel %vm1213, %v1200, %v1203
    %v1222 = vsel %vm1216, %v1209, 920167782
    %v1223 = vsel %vm1215, %v1206, %v1222
    %v1224 = vsel %vm1214, %v1221, %v1223
    %v1225 = vsel %vm1213, %v1203, %v1206
    %v1226 = vsel %vm1216, %v1212, 1326507024
    %v1227 = vsel %vm1215, %v1209, %v1226
    %v1228 = vsel %vm1214, %v1225, %v1227
    %v1229 = vshll.u32 %v1189, 8
    %v1230 = vmul.u32.u64.compose %v1229, %v1228
    %v1231 = vextract.low.u32 %v1230
    %v1232 = vextract.high.u32 %v1230
    %v1233 = vmul.u32.u64.compose %v1229, %v1224
    %v1234 = vextract.low.u32 %v1233
    %v1235 = vextract.high.u32 %v1233
    %v1236 = vmul.u32 %v1229, %v1220
    %v1237 = vadd.s32 %v1232, %v1234
    %vm1238 = vc.u32 %v1232, %v1234
    %v1239 = vadd.s32 %v1235, 1
    %v1240 = vsel %vm1238, %v1239, %v1235
    %v1241 = vadd.s32 %v1236, %v1240
    %v1242 = vadd.s32 %v1241, 536870912
    %v1243 = vshrl.u32 %v1242, 30
    %v1244 = vshll.u32 %v1243, 30
    %v1245 = vsub.s32 %v1241, %v1244
    %vm1246 = vcmp.lt.s32.totalorder %v1245, 0
    %v1247 = vsub.s32 0, %v1245
    %v1248 = vsel %vm1246, %v1247, %v1245
    %v1249 = vclz %v1248
    %v1250 = vsub.s32 %v1249, 2
    %vm1251 = vcmp.gt.s32.totalorder 0, %v1250
    %v1252 = vsel %vm1251, 0, %v1250
    %v1253 = vsub.s32 32, %v1252
    %v1254 = vshll.u32 %v1245, %v1252
    %v1255 = vshrl.u32 %v1237, %v1253
    %v1256 = vor.u32 %v1254, %v1255
    %v1257 = vsub.s32 4294967266, %v1252
    %v1258 = vadd.s32 %v1257, 127
    %v1259 = vshll.u32 %v1258, 23
    %v1260 = vor.u32 4788187, %v1259
    %v1261 = vand.u32 2147483647, %v1260
    %v1263 = vcvt.s32.f32 %v1256
    %v1264 = vmul.f32 %v1263, %v1261
    %v1265 = vxor.u32 %v1264, 2147483648
    %v1266 = vsel %vm1183, %v1265, %v1264
    %v1267 = vsub.s32 4, %v1243
    %v1268 = vsel %vm1183, %v1267, %v1243
    %v1269 = vsel %vm1182, %v230, %v1266
    %v1270 = vsel %vm1182, 0, %v1268
    %v1271 = vcosq.f32.pop %v1269
    %v1272 = vsinq.f32.pop %v1269
    %vm1273 = vweird.f32 %v230
    %v1274 = vadd.s32 %v1270, 3
    %v1275 = vand.u32 %v1274, 3
    %vm1276 = vcmp.lt.s32.totalorder %v1275, 2
    %vm1277 = vcmp.eq.s32.totalorder %v1275, 0
    %v1278 = vxor.u32 %v1272, 2147483648
    %v1279 = vsel %vm1277, %v1271, %v1278
    %vm1280 = vcmp.eq.s32.totalorder %v1275, 2
    %v1281 = vxor.u32 %v1271, 2147483648
    %v1282 = vsel %vm1280, %v1281, %v1272
    %v1283 = vsel %vm1276, %v1279, %v1282
    %v1284 = vsel %vm1273, nan, %v1283
    %v1285 = vand.u32 2147483647, %v231
    %vm1286 = vcmp.le.f32.partialorder %v1285, 0.7853982
    %vm1287 = vcmp.lt.s32.totalorder %v231, 0
    %v1288 = vand.u32 %v231, 2139095040
    %v1289 = vshrl.u32 %v1288, 23
    %v1290 = vsub.s32 %v1289, 127
    %v1291 = vand.u32 2147483647, %v231
    %v1292 = vand.u32 %v1291, 8388607
    %v1293 = vor.u32 %v1292, 8388608
    %v1294 = vsub.s32 0, %v1293
    %v1295 = vadd.s32 %v1290, 1
    %vm1296 = vcmp.gt.s32.totalorder %v1295, 0
    %v1297 = vsel %vm1296, %v1295, 0
    %v1298 = vshrl.u32 %v1297, 5
    %v1299 = vand.u32 %v1297, 31
    %v1300 = vsub.s32 32, %v1299
    %v1301 = vshrl.u32 683565275, %v1300
    %v1302 = vshll.u32 683565275, %v1299
    %v1303 = vshrl.u32 2475754826, %v1300
    %v1304 = vor.u32 %v1302, %v1303
    %v1305 = vshll.u32 2475754826, %v1299
    %v1306 = vshrl.u32 2131351028, %v1300
    %v1307 = vor.u32 %v1305, %v1306
    %v1308 = vshll.u32 2131351028, %v1299
    %v1309 = vshrl.u32 2102212464, %v1300
    %v1310 = vor.u32 %v1308, %v1309
    %v1311 = vshll.u32 2102212464, %v1299
    %v1312 = vshrl.u32 920167782, %v1300
    %v1313 = vor.u32 %v1311, %v1312
    %v1314 = vshll.u32 920167782, %v1299
    %v1315 = vshrl.u32 1326507024, %v1300
    %v1316 = vor.u32 %v1314, %v1315
    %vm1317 = vcmp.lt.s32.totalorder %v1298, 1
    %vm1318 = vcmp.lt.s32.totalorder %v1298, 2
    %vm1319 = vcmp.lt.s32.totalorder %v1298, 3
    %vm1320 = vcmp.lt.s32.totalorder %v1298, 4
    %v1321 = vsel %vm1317, %v1301, %v1304
    %v1322 = vsel %vm1320, %v1310, 2102212464
    %v1323 = vsel %vm1319, %v1307, %v1322
    %v1324 = vsel %vm1318, %v1321, %v1323
    %v1325 = vsel %vm1317, %v1304, %v1307
    %v1326 = vsel %vm1320, %v1313, 920167782
    %v1327 = vsel %vm1319, %v1310, %v1326
    %v1328 = vsel %vm1318, %v1325, %v1327
    %v1329 = vsel %vm1317, %v1307, %v1310
    %v1330 = vsel %vm1320, %v1316, 1326507024
    %v1331 = vsel %vm1319, %v1313, %v1330
    %v1332 = vsel %vm1318, %v1329, %v1331
    %v1333 = vshll.u32 %v1293, 8
    %v1334 = vmul.u32.u64.compose %v1333, %v1332
    %v1335 = vextract.low.u32 %v1334
    %v1336 = vextract.high.u32 %v1334
    %v1337 = vmul.u32.u64.compose %v1333, %v1328
    %v1338 = vextract.low.u32 %v1337
    %v1339 = vextract.high.u32 %v1337
    %v1340 = vmul.u32 %v1333, %v1324
    %v1341 = vadd.s32 %v1336, %v1338
    %vm1342 = vc.u32 %v1336, %v1338
    %v1343 = vadd.s32 %v1339, 1
    %v1344 = vsel %vm1342, %v1343, %v1339
    %v1345 = vadd.s32 %v1340, %v1344
    %v1346 = vadd.s32 %v1345, 536870912
    %v1347 = vshrl.u32 %v1346, 30
    %v1348 = vshll.u32 %v1347, 30
    %v1349 = vsub.s32 %v1345, %v1348
    %vm1350 = vcmp.lt.s32.totalorder %v1349, 0
    %v1351 = vsub.s32 0, %v1349
    %v1352 = vsel %vm1350, %v1351, %v1349
    %v1353 = vclz %v1352
    %v1354 = vsub.s32 %v1353, 2
    %vm1355 = vcmp.gt.s32.totalorder 0, %v1354
    %v1356 = vsel %vm1355, 0, %v1354
    %v1357 = vsub.s32 32, %v1356
    %v1358 = vshll.u32 %v1349, %v1356
    %v1359 = vshrl.u32 %v1341, %v1357
    %v1360 = vor.u32 %v1358, %v1359
    %v1361 = vsub.s32 4294967266, %v1356
    %v1362 = vadd.s32 %v1361, 127
    %v1363 = vshll.u32 %v1362, 23
    %v1364 = vor.u32 4788187, %v1363
    %v1365 = vand.u32 2147483647, %v1364
    %v1367 = vcvt.s32.f32 %v1360
    %v1368 = vmul.f32 %v1367, %v1365
    %v1369 = vxor.u32 %v1368, 2147483648
    %v1370 = vsel %vm1287, %v1369, %v1368
    %v1371 = vsub.s32 4, %v1347
    %v1372 = vsel %vm1287, %v1371, %v1347
    %v1373 = vsel %vm1286, %v231, %v1370
    %v1374 = vsel %vm1286, 0, %v1372
    %v1375 = vcosq.f32.pop %v1373
    %v1376 = vsinq.f32.pop %v1373
    %vm1377 = vweird.f32 %v231
    %v1378 = vadd.s32 %v1374, 3
    %v1379 = vand.u32 %v1378, 3
    %vm1380 = vcmp.lt.s32.totalorder %v1379, 2
    %vm1381 = vcmp.eq.s32.totalorder %v1379, 0
    %v1382 = vxor.u32 %v1376, 2147483648
    %v1383 = vsel %vm1381, %v1375, %v1382
    %vm1384 = vcmp.eq.s32.totalorder %v1379, 2
    %v1385 = vxor.u32 %v1375, 2147483648
    %v1386 = vsel %vm1384, %v1385, %v1376
    %v1387 = vsel %vm1380, %v1383, %v1386
    %v1388 = vsel %vm1377, nan, %v1387
    %v1389 = vand.u32 2147483647, %v232
    %vm1390 = vcmp.le.f32.partialorder %v1389, 0.7853982
    %vm1391 = vcmp.lt.s32.totalorder %v232, 0
    %v1392 = vand.u32 %v232, 2139095040
    %v1393 = vshrl.u32 %v1392, 23
    %v1394 = vsub.s32 %v1393, 127
    %v1395 = vand.u32 2147483647, %v232
    %v1396 = vand.u32 %v1395, 8388607
    %v1397 = vor.u32 %v1396, 8388608
    %v1398 = vsub.s32 0, %v1397
    %v1399 = vadd.s32 %v1394, 1
    %vm1400 = vcmp.gt.s32.totalorder %v1399, 0
    %v1401 = vsel %vm1400, %v1399, 0
    %v1402 = vshrl.u32 %v1401, 5
    %v1403 = vand.u32 %v1401, 31
    %v1404 = vsub.s32 32, %v1403
    %v1405 = vshrl.u32 683565275, %v1404
    %v1406 = vshll.u32 683565275, %v1403
    %v1407 = vshrl.u32 2475754826, %v1404
    %v1408 = vor.u32 %v1406, %v1407
    %v1409 = vshll.u32 2475754826, %v1403
    %v1410 = vshrl.u32 2131351028, %v1404
    %v1411 = vor.u32 %v1409, %v1410
    %v1412 = vshll.u32 2131351028, %v1403
    %v1413 = vshrl.u32 2102212464, %v1404
    %v1414 = vor.u32 %v1412, %v1413
    %v1415 = vshll.u32 2102212464, %v1403
    %v1416 = vshrl.u32 920167782, %v1404
    %v1417 = vor.u32 %v1415, %v1416
    %v1418 = vshll.u32 920167782, %v1403
    %v1419 = vshrl.u32 1326507024, %v1404
    %v1420 = vor.u32 %v1418, %v1419
    %vm1421 = vcmp.lt.s32.totalorder %v1402, 1
    %vm1422 = vcmp.lt.s32.totalorder %v1402, 2
    %vm1423 = vcmp.lt.s32.totalorder %v1402, 3
    %vm1424 = vcmp.lt.s32.totalorder %v1402, 4
    %v1425 = vsel %vm1421, %v1405, %v1408
    %v1426 = vsel %vm1424, %v1414, 2102212464
    %v1427 = vsel %vm1423, %v1411, %v1426
    %v1428 = vsel %vm1422, %v1425, %v1427
    %v1429 = vsel %vm1421, %v1408, %v1411
    %v1430 = vsel %vm1424, %v1417, 920167782
    %v1431 = vsel %vm1423, %v1414, %v1430
    %v1432 = vsel %vm1422, %v1429, %v1431
    %v1433 = vsel %vm1421, %v1411, %v1414
    %v1434 = vsel %vm1424, %v1420, 1326507024
    %v1435 = vsel %vm1423, %v1417, %v1434
    %v1436 = vsel %vm1422, %v1433, %v1435
    %v1437 = vshll.u32 %v1397, 8
    %v1438 = vmul.u32.u64.compose %v1437, %v1436
    %v1439 = vextract.low.u32 %v1438
    %v1440 = vextract.high.u32 %v1438
    %v1441 = vmul.u32.u64.compose %v1437, %v1432
    %v1442 = vextract.low.u32 %v1441
    %v1443 = vextract.high.u32 %v1441
    %v1444 = vmul.u32 %v1437, %v1428
    %v1445 = vadd.s32 %v1440, %v1442
    %vm1446 = vc.u32 %v1440, %v1442
    %v1447 = vadd.s32 %v1443, 1
    %v1448 = vsel %vm1446, %v1447, %v1443
    %v1449 = vadd.s32 %v1444, %v1448
    %v1450 = vadd.s32 %v1449, 536870912
    %v1451 = vshrl.u32 %v1450, 30
    %v1452 = vshll.u32 %v1451, 30
    %v1453 = vsub.s32 %v1449, %v1452
    %vm1454 = vcmp.lt.s32.totalorder %v1453, 0
    %v1455 = vsub.s32 0, %v1453
    %v1456 = vsel %vm1454, %v1455, %v1453
    %v1457 = vclz %v1456
    %v1458 = vsub.s32 %v1457, 2
    %vm1459 = vcmp.gt.s32.totalorder 0, %v1458
    %v1460 = vsel %vm1459, 0, %v1458
    %v1461 = vsub.s32 32, %v1460
    %v1462 = vshll.u32 %v1453, %v1460
    %v1463 = vshrl.u32 %v1445, %v1461
    %v1464 = vor.u32 %v1462, %v1463
    %v1465 = vsub.s32 4294967266, %v1460
    %v1466 = vadd.s32 %v1465, 127
    %v1467 = vshll.u32 %v1466, 23
    %v1468 = vor.u32 4788187, %v1467
    %v1469 = vand.u32 2147483647, %v1468
    %v1471 = vcvt.s32.f32 %v1464
    %v1472 = vmul.f32 %v1471, %v1469
    %v1473 = vxor.u32 %v1472, 2147483648
    %v1474 = vsel %vm1391, %v1473, %v1472
    %v1475 = vsub.s32 4, %v1451
    %v1476 = vsel %vm1391, %v1475, %v1451
    %v1477 = vsel %vm1390, %v232, %v1474
    %v1478 = vsel %vm1390, 0, %v1476
    %v1479 = vcosq.f32.pop %v1477
    %v1480 = vsinq.f32.pop %v1477
    %vm1481 = vweird.f32 %v232
    %v1482 = vadd.s32 %v1478, 3
    %v1483 = vand.u32 %v1482, 3
    %vm1484 = vcmp.lt.s32.totalorder %v1483, 2
    %vm1485 = vcmp.eq.s32.totalorder %v1483, 0
    %v1486 = vxor.u32 %v1480, 2147483648
    %v1487 = vsel %vm1485, %v1479, %v1486
    %vm1488 = vcmp.eq.s32.totalorder %v1483, 2
    %v1489 = vxor.u32 %v1479, 2147483648
    %v1490 = vsel %vm1488, %v1489, %v1480
    %v1491 = vsel %vm1484, %v1487, %v1490
    %v1492 = vsel %vm1481, nan, %v1491
    %v1493 = vand.u32 2147483647, %v233
    %vm1494 = vcmp.le.f32.partialorder %v1493, 0.7853982
    %vm1495 = vcmp.lt.s32.totalorder %v233, 0
    %v1496 = vand.u32 %v233, 2139095040
    %v1497 = vshrl.u32 %v1496, 23
    %v1498 = vsub.s32 %v1497, 127
    %v1499 = vand.u32 2147483647, %v233
    %v1500 = vand.u32 %v1499, 8388607
    %v1501 = vor.u32 %v1500, 8388608
    %v1502 = vsub.s32 0, %v1501
    %v1503 = vadd.s32 %v1498, 1
    %vm1504 = vcmp.gt.s32.totalorder %v1503, 0
    %v1505 = vsel %vm1504, %v1503, 0
    %v1506 = vshrl.u32 %v1505, 5
    %v1507 = vand.u32 %v1505, 31
    %v1508 = vsub.s32 32, %v1507
    %v1509 = vshrl.u32 683565275, %v1508
    %v1510 = vshll.u32 683565275, %v1507
    %v1511 = vshrl.u32 2475754826, %v1508
    %v1512 = vor.u32 %v1510, %v1511
    %v1513 = vshll.u32 2475754826, %v1507
    %v1514 = vshrl.u32 2131351028, %v1508
    %v1515 = vor.u32 %v1513, %v1514
    %v1516 = vshll.u32 2131351028, %v1507
    %v1517 = vshrl.u32 2102212464, %v1508
    %v1518 = vor.u32 %v1516, %v1517
    %v1519 = vshll.u32 2102212464, %v1507
    %v1520 = vshrl.u32 920167782, %v1508
    %v1521 = vor.u32 %v1519, %v1520
    %v1522 = vshll.u32 920167782, %v1507
    %v1523 = vshrl.u32 1326507024, %v1508
    %v1524 = vor.u32 %v1522, %v1523
    %vm1525 = vcmp.lt.s32.totalorder %v1506, 1
    %vm1526 = vcmp.lt.s32.totalorder %v1506, 2
    %vm1527 = vcmp.lt.s32.totalorder %v1506, 3
    %vm1528 = vcmp.lt.s32.totalorder %v1506, 4
    %v1529 = vsel %vm1525, %v1509, %v1512
    %v1530 = vsel %vm1528, %v1518, 2102212464
    %v1531 = vsel %vm1527, %v1515, %v1530
    %v1532 = vsel %vm1526, %v1529, %v1531
    %v1533 = vsel %vm1525, %v1512, %v1515
    %v1534 = vsel %vm1528, %v1521, 920167782
    %v1535 = vsel %vm1527, %v1518, %v1534
    %v1536 = vsel %vm1526, %v1533, %v1535
    %v1537 = vsel %vm1525, %v1515, %v1518
    %v1538 = vsel %vm1528, %v1524, 1326507024
    %v1539 = vsel %vm1527, %v1521, %v1538
    %v1540 = vsel %vm1526, %v1537, %v1539
    %v1541 = vshll.u32 %v1501, 8
    %v1542 = vmul.u32.u64.compose %v1541, %v1540
    %v1543 = vextract.low.u32 %v1542
    %v1544 = vextract.high.u32 %v1542
    %v1545 = vmul.u32.u64.compose %v1541, %v1536
    %v1546 = vextract.low.u32 %v1545
    %v1547 = vextract.high.u32 %v1545
    %v1548 = vmul.u32 %v1541, %v1532
    %v1549 = vadd.s32 %v1544, %v1546
    %vm1550 = vc.u32 %v1544, %v1546
    %v1551 = vadd.s32 %v1547, 1
    %v1552 = vsel %vm1550, %v1551, %v1547
    %v1553 = vadd.s32 %v1548, %v1552
    %v1554 = vadd.s32 %v1553, 536870912
    %v1555 = vshrl.u32 %v1554, 30
    %v1556 = vshll.u32 %v1555, 30
    %v1557 = vsub.s32 %v1553, %v1556
    %vm1558 = vcmp.lt.s32.totalorder %v1557, 0
    %v1559 = vsub.s32 0, %v1557
    %v1560 = vsel %vm1558, %v1559, %v1557
    %v1561 = vclz %v1560
    %v1562 = vsub.s32 %v1561, 2
    %vm1563 = vcmp.gt.s32.totalorder 0, %v1562
    %v1564 = vsel %vm1563, 0, %v1562
    %v1565 = vsub.s32 32, %v1564
    %v1566 = vshll.u32 %v1557, %v1564
    %v1567 = vshrl.u32 %v1549, %v1565
    %v1568 = vor.u32 %v1566, %v1567
    %v1569 = vsub.s32 4294967266, %v1564
    %v1570 = vadd.s32 %v1569, 127
    %v1571 = vshll.u32 %v1570, 23
    %v1572 = vor.u32 4788187, %v1571
    %v1573 = vand.u32 2147483647, %v1572
    %v1575 = vcvt.s32.f32 %v1568
    %v1576 = vmul.f32 %v1575, %v1573
    %v1577 = vxor.u32 %v1576, 2147483648
    %v1578 = vsel %vm1495, %v1577, %v1576
    %v1579 = vsub.s32 4, %v1555
    %v1580 = vsel %vm1495, %v1579, %v1555
    %v1581 = vsel %vm1494, %v233, %v1578
    %v1582 = vsel %vm1494, 0, %v1580
    %v1583 = vcosq.f32.pop %v1581
    %v1584 = vsinq.f32.pop %v1581
    %vm1585 = vweird.f32 %v233
    %v1586 = vadd.s32 %v1582, 3
    %v1587 = vand.u32 %v1586, 3
    %vm1588 = vcmp.lt.s32.totalorder %v1587, 2
    %vm1589 = vcmp.eq.s32.totalorder %v1587, 0
    %v1590 = vxor.u32 %v1584, 2147483648
    %v1591 = vsel %vm1589, %v1583, %v1590
    %vm1592 = vcmp.eq.s32.totalorder %v1587, 2
    %v1593 = vxor.u32 %v1583, 2147483648
    %v1594 = vsel %vm1592, %v1593, %v1584
    %v1595 = vsel %vm1588, %v1591, %v1594
    %v1596 = vsel %vm1585, nan, %v1595
    %v1597 = vand.u32 2147483647, %v234
    %vm1598 = vcmp.le.f32.partialorder %v1597, 0.7853982
    %vm1599 = vcmp.lt.s32.totalorder %v234, 0
    %v1600 = vand.u32 %v234, 2139095040
    %v1601 = vshrl.u32 %v1600, 23
    %v1602 = vsub.s32 %v1601, 127
    %v1603 = vand.u32 2147483647, %v234
    %v1604 = vand.u32 %v1603, 8388607
    %v1605 = vor.u32 %v1604, 8388608
    %v1606 = vsub.s32 0, %v1605
    %v1607 = vadd.s32 %v1602, 1
    %vm1608 = vcmp.gt.s32.totalorder %v1607, 0
    %v1609 = vsel %vm1608, %v1607, 0
    %v1610 = vshrl.u32 %v1609, 5
    %v1611 = vand.u32 %v1609, 31
    %v1612 = vsub.s32 32, %v1611
    %v1613 = vshrl.u32 683565275, %v1612
    %v1614 = vshll.u32 683565275, %v1611
    %v1615 = vshrl.u32 2475754826, %v1612
    %v1616 = vor.u32 %v1614, %v1615
    %v1617 = vshll.u32 2475754826, %v1611
    %v1618 = vshrl.u32 2131351028, %v1612
    %v1619 = vor.u32 %v1617, %v1618
    %v1620 = vshll.u32 2131351028, %v1611
    %v1621 = vshrl.u32 2102212464, %v1612
    %v1622 = vor.u32 %v1620, %v1621
    %v1623 = vshll.u32 2102212464, %v1611
    %v1624 = vshrl.u32 920167782, %v1612
    %v1625 = vor.u32 %v1623, %v1624
    %v1626 = vshll.u32 920167782, %v1611
    %v1627 = vshrl.u32 1326507024, %v1612
    %v1628 = vor.u32 %v1626, %v1627
    %vm1629 = vcmp.lt.s32.totalorder %v1610, 1
    %vm1630 = vcmp.lt.s32.totalorder %v1610, 2
    %vm1631 = vcmp.lt.s32.totalorder %v1610, 3
    %vm1632 = vcmp.lt.s32.totalorder %v1610, 4
    %v1633 = vsel %vm1629, %v1613, %v1616
    %v1634 = vsel %vm1632, %v1622, 2102212464
    %v1635 = vsel %vm1631, %v1619, %v1634
    %v1636 = vsel %vm1630, %v1633, %v1635
    %v1637 = vsel %vm1629, %v1616, %v1619
    %v1638 = vsel %vm1632, %v1625, 920167782
    %v1639 = vsel %vm1631, %v1622, %v1638
    %v1640 = vsel %vm1630, %v1637, %v1639
    %v1641 = vsel %vm1629, %v1619, %v1622
    %v1642 = vsel %vm1632, %v1628, 1326507024
    %v1643 = vsel %vm1631, %v1625, %v1642
    %v1644 = vsel %vm1630, %v1641, %v1643
    %v1645 = vshll.u32 %v1605, 8
    %v1646 = vmul.u32.u64.compose %v1645, %v1644
    %v1647 = vextract.low.u32 %v1646
    %v1648 = vextract.high.u32 %v1646
    %v1649 = vmul.u32.u64.compose %v1645, %v1640
    %v1650 = vextract.low.u32 %v1649
    %v1651 = vextract.high.u32 %v1649
    %v1652 = vmul.u32 %v1645, %v1636
    %v1653 = vadd.s32 %v1648, %v1650
    %vm1654 = vc.u32 %v1648, %v1650
    %v1655 = vadd.s32 %v1651, 1
    %v1656 = vsel %vm1654, %v1655, %v1651
    %v1657 = vadd.s32 %v1652, %v1656
    %v1658 = vadd.s32 %v1657, 536870912
    %v1659 = vshrl.u32 %v1658, 30
    %v1660 = vshll.u32 %v1659, 30
    %v1661 = vsub.s32 %v1657, %v1660
    %vm1662 = vcmp.lt.s32.totalorder %v1661, 0
    %v1663 = vsub.s32 0, %v1661
    %v1664 = vsel %vm1662, %v1663, %v1661
    %v1665 = vclz %v1664
    %v1666 = vsub.s32 %v1665, 2
    %vm1667 = vcmp.gt.s32.totalorder 0, %v1666
    %v1668 = vsel %vm1667, 0, %v1666
    %v1669 = vsub.s32 32, %v1668
    %v1670 = vshll.u32 %v1661, %v1668
    %v1671 = vshrl.u32 %v1653, %v1669
    %v1672 = vor.u32 %v1670, %v1671
    %v1673 = vsub.s32 4294967266, %v1668
    %v1674 = vadd.s32 %v1673, 127
    %v1675 = vshll.u32 %v1674, 23
    %v1676 = vor.u32 4788187, %v1675
    %v1677 = vand.u32 2147483647, %v1676
    %v1679 = vcvt.s32.f32 %v1672
    %v1680 = vmul.f32 %v1679, %v1677
    %v1681 = vxor.u32 %v1680, 2147483648
    %v1682 = vsel %vm1599, %v1681, %v1680
    %v1683 = vsub.s32 4, %v1659
    %v1684 = vsel %vm1599, %v1683, %v1659
    %v1685 = vsel %vm1598, %v234, %v1682
    %v1686 = vsel %vm1598, 0, %v1684
    %v1687 = vcosq.f32.pop %v1685
    %v1688 = vsinq.f32.pop %v1685
    %vm1689 = vweird.f32 %v234
    %v1690 = vadd.s32 %v1686, 3
    %v1691 = vand.u32 %v1690, 3
    %vm1692 = vcmp.lt.s32.totalorder %v1691, 2
    %vm1693 = vcmp.eq.s32.totalorder %v1691, 0
    %v1694 = vxor.u32 %v1688, 2147483648
    %v1695 = vsel %vm1693, %v1687, %v1694
    %vm1696 = vcmp.eq.s32.totalorder %v1691, 2
    %v1697 = vxor.u32 %v1687, 2147483648
    %v1698 = vsel %vm1696, %v1697, %v1688
    %v1699 = vsel %vm1692, %v1695, %v1698
    %v1700 = vsel %vm1689, nan, %v1699
    %v1701 = vand.u32 2147483647, %v235
    %vm1702 = vcmp.le.f32.partialorder %v1701, 0.7853982
    %vm1703 = vcmp.lt.s32.totalorder %v235, 0
    %v1704 = vand.u32 %v235, 2139095040
    %v1705 = vshrl.u32 %v1704, 23
    %v1706 = vsub.s32 %v1705, 127
    %v1707 = vand.u32 2147483647, %v235
    %v1708 = vand.u32 %v1707, 8388607
    %v1709 = vor.u32 %v1708, 8388608
    %v1710 = vsub.s32 0, %v1709
    %v1711 = vadd.s32 %v1706, 1
    %vm1712 = vcmp.gt.s32.totalorder %v1711, 0
    %v1713 = vsel %vm1712, %v1711, 0
    %v1714 = vshrl.u32 %v1713, 5
    %v1715 = vand.u32 %v1713, 31
    %v1716 = vsub.s32 32, %v1715
    %v1717 = vshrl.u32 683565275, %v1716
    %v1718 = vshll.u32 683565275, %v1715
    %v1719 = vshrl.u32 2475754826, %v1716
    %v1720 = vor.u32 %v1718, %v1719
    %v1721 = vshll.u32 2475754826, %v1715
    %v1722 = vshrl.u32 2131351028, %v1716
    %v1723 = vor.u32 %v1721, %v1722
    %v1724 = vshll.u32 2131351028, %v1715
    %v1725 = vshrl.u32 2102212464, %v1716
    %v1726 = vor.u32 %v1724, %v1725
    %v1727 = vshll.u32 2102212464, %v1715
    %v1728 = vshrl.u32 920167782, %v1716
    %v1729 = vor.u32 %v1727, %v1728
    %v1730 = vshll.u32 920167782, %v1715
    %v1731 = vshrl.u32 1326507024, %v1716
    %v1732 = vor.u32 %v1730, %v1731
    %vm1733 = vcmp.lt.s32.totalorder %v1714, 1
    %vm1734 = vcmp.lt.s32.totalorder %v1714, 2
    %vm1735 = vcmp.lt.s32.totalorder %v1714, 3
    %vm1736 = vcmp.lt.s32.totalorder %v1714, 4
    %v1737 = vsel %vm1733, %v1717, %v1720
    %v1738 = vsel %vm1736, %v1726, 2102212464
    %v1739 = vsel %vm1735, %v1723, %v1738
    %v1740 = vsel %vm1734, %v1737, %v1739
    %v1741 = vsel %vm1733, %v1720, %v1723
    %v1742 = vsel %vm1736, %v1729, 920167782
    %v1743 = vsel %vm1735, %v1726, %v1742
    %v1744 = vsel %vm1734, %v1741, %v1743
    %v1745 = vsel %vm1733, %v1723, %v1726
    %v1746 = vsel %vm1736, %v1732, 1326507024
    %v1747 = vsel %vm1735, %v1729, %v1746
    %v1748 = vsel %vm1734, %v1745, %v1747
    %v1749 = vshll.u32 %v1709, 8
    %v1750 = vmul.u32.u64.compose %v1749, %v1748
    %v1751 = vextract.low.u32 %v1750
    %v1752 = vextract.high.u32 %v1750
    %v1753 = vmul.u32.u64.compose %v1749, %v1744
    %v1754 = vextract.low.u32 %v1753
    %v1755 = vextract.high.u32 %v1753
    %v1756 = vmul.u32 %v1749, %v1740
    %v1757 = vadd.s32 %v1752, %v1754
    %vm1758 = vc.u32 %v1752, %v1754
    %v1759 = vadd.s32 %v1755, 1
    %v1760 = vsel %vm1758, %v1759, %v1755
    %v1761 = vadd.s32 %v1756, %v1760
    %v1762 = vadd.s32 %v1761, 536870912
    %v1763 = vshrl.u32 %v1762, 30
    %v1764 = vshll.u32 %v1763, 30
    %v1765 = vsub.s32 %v1761, %v1764
    %vm1766 = vcmp.lt.s32.totalorder %v1765, 0
    %v1767 = vsub.s32 0, %v1765
    %v1768 = vsel %vm1766, %v1767, %v1765
    %v1769 = vclz %v1768
    %v1770 = vsub.s32 %v1769, 2
    %vm1771 = vcmp.gt.s32.totalorder 0, %v1770
    %v1772 = vsel %vm1771, 0, %v1770
    %v1773 = vsub.s32 32, %v1772
    %v1774 = vshll.u32 %v1765, %v1772
    %v1775 = vshrl.u32 %v1757, %v1773
    %v1776 = vor.u32 %v1774, %v1775
    %v1777 = vsub.s32 4294967266, %v1772
    %v1778 = vadd.s32 %v1777, 127
    %v1779 = vshll.u32 %v1778, 23
    %v1780 = vor.u32 4788187, %v1779
    %v1781 = vand.u32 2147483647, %v1780
    %v1783 = vcvt.s32.f32 %v1776
    %v1784 = vmul.f32 %v1783, %v1781
    %v1785 = vxor.u32 %v1784, 2147483648
    %v1786 = vsel %vm1703, %v1785, %v1784
    %v1787 = vsub.s32 4, %v1763
    %v1788 = vsel %vm1703, %v1787, %v1763
    %v1789 = vsel %vm1702, %v235, %v1786
    %v1790 = vsel %vm1702, 0, %v1788
    %v1791 = vcosq.f32.pop %v1789
    %v1792 = vsinq.f32.pop %v1789
    %vm1793 = vweird.f32 %v235
    %v1794 = vadd.s32 %v1790, 3
    %v1795 = vand.u32 %v1794, 3
    %vm1796 = vcmp.lt.s32.totalorder %v1795, 2
    %vm1797 = vcmp.eq.s32.totalorder %v1795, 0
    %v1798 = vxor.u32 %v1792, 2147483648
    %v1799 = vsel %vm1797, %v1791, %v1798
    %vm1800 = vcmp.eq.s32.totalorder %v1795, 2
    %v1801 = vxor.u32 %v1791, 2147483648
    %v1802 = vsel %vm1800, %v1801, %v1792
    %v1803 = vsel %vm1796, %v1799, %v1802
    %v1804 = vsel %vm1793, nan, %v1803
    %v1805 = vand.u32 2147483647, %v236
    %vm1806 = vcmp.le.f32.partialorder %v1805, 0.7853982
    %vm1807 = vcmp.lt.s32.totalorder %v236, 0
    %v1808 = vand.u32 %v236, 2139095040
    %v1809 = vshrl.u32 %v1808, 23
    %v1810 = vsub.s32 %v1809, 127
    %v1811 = vand.u32 2147483647, %v236
    %v1812 = vand.u32 %v1811, 8388607
    %v1813 = vor.u32 %v1812, 8388608
    %v1814 = vsub.s32 0, %v1813
    %v1815 = vadd.s32 %v1810, 1
    %vm1816 = vcmp.gt.s32.totalorder %v1815, 0
    %v1817 = vsel %vm1816, %v1815, 0
    %v1818 = vshrl.u32 %v1817, 5
    %v1819 = vand.u32 %v1817, 31
    %v1820 = vsub.s32 32, %v1819
    %v1821 = vshrl.u32 683565275, %v1820
    %v1822 = vshll.u32 683565275, %v1819
    %v1823 = vshrl.u32 2475754826, %v1820
    %v1824 = vor.u32 %v1822, %v1823
    %v1825 = vshll.u32 2475754826, %v1819
    %v1826 = vshrl.u32 2131351028, %v1820
    %v1827 = vor.u32 %v1825, %v1826
    %v1828 = vshll.u32 2131351028, %v1819
    %v1829 = vshrl.u32 2102212464, %v1820
    %v1830 = vor.u32 %v1828, %v1829
    %v1831 = vshll.u32 2102212464, %v1819
    %v1832 = vshrl.u32 920167782, %v1820
    %v1833 = vor.u32 %v1831, %v1832
    %v1834 = vshll.u32 920167782, %v1819
    %v1835 = vshrl.u32 1326507024, %v1820
    %v1836 = vor.u32 %v1834, %v1835
    %vm1837 = vcmp.lt.s32.totalorder %v1818, 1
    %vm1838 = vcmp.lt.s32.totalorder %v1818, 2
    %vm1839 = vcmp.lt.s32.totalorder %v1818, 3
    %vm1840 = vcmp.lt.s32.totalorder %v1818, 4
    %v1841 = vsel %vm1837, %v1821, %v1824
    %v1842 = vsel %vm1840, %v1830, 2102212464
    %v1843 = vsel %vm1839, %v1827, %v1842
    %v1844 = vsel %vm1838, %v1841, %v1843
    %v1845 = vsel %vm1837, %v1824, %v1827
    %v1846 = vsel %vm1840, %v1833, 920167782
    %v1847 = vsel %vm1839, %v1830, %v1846
    %v1848 = vsel %vm1838, %v1845, %v1847
    %v1849 = vsel %vm1837, %v1827, %v1830
    %v1850 = vsel %vm1840, %v1836, 1326507024
    %v1851 = vsel %vm1839, %v1833, %v1850
    %v1852 = vsel %vm1838, %v1849, %v1851
    %v1853 = vshll.u32 %v1813, 8
    %v1854 = vmul.u32.u64.compose %v1853, %v1852
    %v1855 = vextract.low.u32 %v1854
    %v1856 = vextract.high.u32 %v1854
    %v1857 = vmul.u32.u64.compose %v1853, %v1848
    %v1858 = vextract.low.u32 %v1857
    %v1859 = vextract.high.u32 %v1857
    %v1860 = vmul.u32 %v1853, %v1844
    %v1861 = vadd.s32 %v1856, %v1858
    %vm1862 = vc.u32 %v1856, %v1858
    %v1863 = vadd.s32 %v1859, 1
    %v1864 = vsel %vm1862, %v1863, %v1859
    %v1865 = vadd.s32 %v1860, %v1864
    %v1866 = vadd.s32 %v1865, 536870912
    %v1867 = vshrl.u32 %v1866, 30
    %v1868 = vshll.u32 %v1867, 30
    %v1869 = vsub.s32 %v1865, %v1868
    %vm1870 = vcmp.lt.s32.totalorder %v1869, 0
    %v1871 = vsub.s32 0, %v1869
    %v1872 = vsel %vm1870, %v1871, %v1869
    %v1873 = vclz %v1872
    %v1874 = vsub.s32 %v1873, 2
    %vm1875 = vcmp.gt.s32.totalorder 0, %v1874
    %v1876 = vsel %vm1875, 0, %v1874
    %v1877 = vsub.s32 32, %v1876
    %v1878 = vshll.u32 %v1869, %v1876
    %v1879 = vshrl.u32 %v1861, %v1877
    %v1880 = vor.u32 %v1878, %v1879
    %v1881 = vsub.s32 4294967266, %v1876
    %v1882 = vadd.s32 %v1881, 127
    %v1883 = vshll.u32 %v1882, 23
    %v1884 = vor.u32 4788187, %v1883
    %v1885 = vand.u32 2147483647, %v1884
    %v1887 = vcvt.s32.f32 %v1880
    %v1888 = vmul.f32 %v1887, %v1885
    %v1889 = vxor.u32 %v1888, 2147483648
    %v1890 = vsel %vm1807, %v1889, %v1888
    %v1891 = vsub.s32 4, %v1867
    %v1892 = vsel %vm1807, %v1891, %v1867
    %v1893 = vsel %vm1806, %v236, %v1890
    %v1894 = vsel %vm1806, 0, %v1892
    %v1895 = vcosq.f32.pop %v1893
    %v1896 = vsinq.f32.pop %v1893
    %vm1897 = vweird.f32 %v236
    %v1898 = vadd.s32 %v1894, 3
    %v1899 = vand.u32 %v1898, 3
    %vm1900 = vcmp.lt.s32.totalorder %v1899, 2
    %vm1901 = vcmp.eq.s32.totalorder %v1899, 0
    %v1902 = vxor.u32 %v1896, 2147483648
    %v1903 = vsel %vm1901, %v1895, %v1902
    %vm1904 = vcmp.eq.s32.totalorder %v1899, 2
    %v1905 = vxor.u32 %v1895, 2147483648
    %v1906 = vsel %vm1904, %v1905, %v1896
    %v1907 = vsel %vm1900, %v1903, %v1906
    %v1908 = vsel %vm1897, nan, %v1907
    %v1909 = vand.u32 2147483647, %v237
    %vm1910 = vcmp.le.f32.partialorder %v1909, 0.7853982
    %vm1911 = vcmp.lt.s32.totalorder %v237, 0
    %v1912 = vand.u32 %v237, 2139095040
    %v1913 = vshrl.u32 %v1912, 23
    %v1914 = vsub.s32 %v1913, 127
    %v1915 = vand.u32 2147483647, %v237
    %v1916 = vand.u32 %v1915, 8388607
    %v1917 = vor.u32 %v1916, 8388608
    %v1918 = vsub.s32 0, %v1917
    %v1919 = vadd.s32 %v1914, 1
    %vm1920 = vcmp.gt.s32.totalorder %v1919, 0
    %v1921 = vsel %vm1920, %v1919, 0
    %v1922 = vshrl.u32 %v1921, 5
    %v1923 = vand.u32 %v1921, 31
    %v1924 = vsub.s32 32, %v1923
    %v1925 = vshrl.u32 683565275, %v1924
    %v1926 = vshll.u32 683565275, %v1923
    %v1927 = vshrl.u32 2475754826, %v1924
    %v1928 = vor.u32 %v1926, %v1927
    %v1929 = vshll.u32 2475754826, %v1923
    %v1930 = vshrl.u32 2131351028, %v1924
    %v1931 = vor.u32 %v1929, %v1930
    %v1932 = vshll.u32 2131351028, %v1923
    %v1933 = vshrl.u32 2102212464, %v1924
    %v1934 = vor.u32 %v1932, %v1933
    %v1935 = vshll.u32 2102212464, %v1923
    %v1936 = vshrl.u32 920167782, %v1924
    %v1937 = vor.u32 %v1935, %v1936
    %v1938 = vshll.u32 920167782, %v1923
    %v1939 = vshrl.u32 1326507024, %v1924
    %v1940 = vor.u32 %v1938, %v1939
    %vm1941 = vcmp.lt.s32.totalorder %v1922, 1
    %vm1942 = vcmp.lt.s32.totalorder %v1922, 2
    %vm1943 = vcmp.lt.s32.totalorder %v1922, 3
    %vm1944 = vcmp.lt.s32.totalorder %v1922, 4
    %v1945 = vsel %vm1941, %v1925, %v1928
    %v1946 = vsel %vm1944, %v1934, 2102212464
    %v1947 = vsel %vm1943, %v1931, %v1946
    %v1948 = vsel %vm1942, %v1945, %v1947
    %v1949 = vsel %vm1941, %v1928, %v1931
    %v1950 = vsel %vm1944, %v1937, 920167782
    %v1951 = vsel %vm1943, %v1934, %v1950
    %v1952 = vsel %vm1942, %v1949, %v1951
    %v1953 = vsel %vm1941, %v1931, %v1934
    %v1954 = vsel %vm1944, %v1940, 1326507024
    %v1955 = vsel %vm1943, %v1937, %v1954
    %v1956 = vsel %vm1942, %v1953, %v1955
    %v1957 = vshll.u32 %v1917, 8
    %v1958 = vmul.u32.u64.compose %v1957, %v1956
    %v1959 = vextract.low.u32 %v1958
    %v1960 = vextract.high.u32 %v1958
    %v1961 = vmul.u32.u64.compose %v1957, %v1952
    %v1962 = vextract.low.u32 %v1961
    %v1963 = vextract.high.u32 %v1961
    %v1964 = vmul.u32 %v1957, %v1948
    %v1965 = vadd.s32 %v1960, %v1962
    %vm1966 = vc.u32 %v1960, %v1962
    %v1967 = vadd.s32 %v1963, 1
    %v1968 = vsel %vm1966, %v1967, %v1963
    %v1969 = vadd.s32 %v1964, %v1968
    %v1970 = vadd.s32 %v1969, 536870912
    %v1971 = vshrl.u32 %v1970, 30
    %v1972 = vshll.u32 %v1971, 30
    %v1973 = vsub.s32 %v1969, %v1972
    %vm1974 = vcmp.lt.s32.totalorder %v1973, 0
    %v1975 = vsub.s32 0, %v1973
    %v1976 = vsel %vm1974, %v1975, %v1973
    %v1977 = vclz %v1976
    %v1978 = vsub.s32 %v1977, 2
    %vm1979 = vcmp.gt.s32.totalorder 0, %v1978
    %v1980 = vsel %vm1979, 0, %v1978
    %v1981 = vsub.s32 32, %v1980
    %v1982 = vshll.u32 %v1973, %v1980
    %v1983 = vshrl.u32 %v1965, %v1981
    %v1984 = vor.u32 %v1982, %v1983
    %v1985 = vsub.s32 4294967266, %v1980
    %v1986 = vadd.s32 %v1985, 127
    %v1987 = vshll.u32 %v1986, 23
    %v1988 = vor.u32 4788187, %v1987
    %v1989 = vand.u32 2147483647, %v1988
    %v1991 = vcvt.s32.f32 %v1984
    %v1992 = vmul.f32 %v1991, %v1989
    %v1993 = vxor.u32 %v1992, 2147483648
    %v1994 = vsel %vm1911, %v1993, %v1992
    %v1995 = vsub.s32 4, %v1971
    %v1996 = vsel %vm1911, %v1995, %v1971
    %v1997 = vsel %vm1910, %v237, %v1994
    %v1998 = vsel %vm1910, 0, %v1996
    %v1999 = vcosq.f32.pop %v1997
    %v2000 = vsinq.f32.pop %v1997
    %vm2001 = vweird.f32 %v237
    %v2002 = vadd.s32 %v1998, 3
    %v2003 = vand.u32 %v2002, 3
    %vm2004 = vcmp.lt.s32.totalorder %v2003, 2
    %vm2005 = vcmp.eq.s32.totalorder %v2003, 0
    %v2006 = vxor.u32 %v2000, 2147483648
    %v2007 = vsel %vm2005, %v1999, %v2006
    %vm2008 = vcmp.eq.s32.totalorder %v2003, 2
    %v2009 = vxor.u32 %v1999, 2147483648
    %v2010 = vsel %vm2008, %v2009, %v2000
    %v2011 = vsel %vm2004, %v2007, %v2010
    %v2012 = vsel %vm2001, nan, %v2011
    %v2013 = vand.u32 2147483647, %v238
    %vm2014 = vcmp.le.f32.partialorder %v2013, 0.7853982
    %vm2015 = vcmp.lt.s32.totalorder %v238, 0
    %v2016 = vand.u32 %v238, 2139095040
    %v2017 = vshrl.u32 %v2016, 23
    %v2018 = vsub.s32 %v2017, 127
    %v2019 = vand.u32 2147483647, %v238
    %v2020 = vand.u32 %v2019, 8388607
    %v2021 = vor.u32 %v2020, 8388608
    %v2022 = vsub.s32 0, %v2021
    %v2023 = vadd.s32 %v2018, 1
    %vm2024 = vcmp.gt.s32.totalorder %v2023, 0
    %v2025 = vsel %vm2024, %v2023, 0
    %v2026 = vshrl.u32 %v2025, 5
    %v2027 = vand.u32 %v2025, 31
    %v2028 = vsub.s32 32, %v2027
    %v2029 = vshrl.u32 683565275, %v2028
    %v2030 = vshll.u32 683565275, %v2027
    %v2031 = vshrl.u32 2475754826, %v2028
    %v2032 = vor.u32 %v2030, %v2031
    %v2033 = vshll.u32 2475754826, %v2027
    %v2034 = vshrl.u32 2131351028, %v2028
    %v2035 = vor.u32 %v2033, %v2034
    %v2036 = vshll.u32 2131351028, %v2027
    %v2037 = vshrl.u32 2102212464, %v2028
    %v2038 = vor.u32 %v2036, %v2037
    %v2039 = vshll.u32 2102212464, %v2027
    %v2040 = vshrl.u32 920167782, %v2028
    %v2041 = vor.u32 %v2039, %v2040
    %v2042 = vshll.u32 920167782, %v2027
    %v2043 = vshrl.u32 1326507024, %v2028
    %v2044 = vor.u32 %v2042, %v2043
    %vm2045 = vcmp.lt.s32.totalorder %v2026, 1
    %vm2046 = vcmp.lt.s32.totalorder %v2026, 2
    %vm2047 = vcmp.lt.s32.totalorder %v2026, 3
    %vm2048 = vcmp.lt.s32.totalorder %v2026, 4
    %v2049 = vsel %vm2045, %v2029, %v2032
    %v2050 = vsel %vm2048, %v2038, 2102212464
    %v2051 = vsel %vm2047, %v2035, %v2050
    %v2052 = vsel %vm2046, %v2049, %v2051
    %v2053 = vsel %vm2045, %v2032, %v2035
    %v2054 = vsel %vm2048, %v2041, 920167782
    %v2055 = vsel %vm2047, %v2038, %v2054
    %v2056 = vsel %vm2046, %v2053, %v2055
    %v2057 = vsel %vm2045, %v2035, %v2038
    %v2058 = vsel %vm2048, %v2044, 1326507024
    %v2059 = vsel %vm2047, %v2041, %v2058
    %v2060 = vsel %vm2046, %v2057, %v2059
    %v2061 = vshll.u32 %v2021, 8
    %v2062 = vmul.u32.u64.compose %v2061, %v2060
    %v2063 = vextract.low.u32 %v2062
    %v2064 = vextract.high.u32 %v2062
    %v2065 = vmul.u32.u64.compose %v2061, %v2056
    %v2066 = vextract.low.u32 %v2065
    %v2067 = vextract.high.u32 %v2065
    %v2068 = vmul.u32 %v2061, %v2052
    %v2069 = vadd.s32 %v2064, %v2066
    %vm2070 = vc.u32 %v2064, %v2066
    %v2071 = vadd.s32 %v2067, 1
    %v2072 = vsel %vm2070, %v2071, %v2067
    %v2073 = vadd.s32 %v2068, %v2072
    %v2074 = vadd.s32 %v2073, 536870912
    %v2075 = vshrl.u32 %v2074, 30
    %v2076 = vshll.u32 %v2075, 30
    %v2077 = vsub.s32 %v2073, %v2076
    %vm2078 = vcmp.lt.s32.totalorder %v2077, 0
    %v2079 = vsub.s32 0, %v2077
    %v2080 = vsel %vm2078, %v2079, %v2077
    %v2081 = vclz %v2080
    %v2082 = vsub.s32 %v2081, 2
    %vm2083 = vcmp.gt.s32.totalorder 0, %v2082
    %v2084 = vsel %vm2083, 0, %v2082
    %v2085 = vsub.s32 32, %v2084
    %v2086 = vshll.u32 %v2077, %v2084
    %v2087 = vshrl.u32 %v2069, %v2085
    %v2088 = vor.u32 %v2086, %v2087
    %v2089 = vsub.s32 4294967266, %v2084
    %v2090 = vadd.s32 %v2089, 127
    %v2091 = vshll.u32 %v2090, 23
    %v2092 = vor.u32 4788187, %v2091
    %v2093 = vand.u32 2147483647, %v2092
    %v2095 = vcvt.s32.f32 %v2088
    %v2096 = vmul.f32 %v2095, %v2093
    %v2097 = vxor.u32 %v2096, 2147483648
    %v2098 = vsel %vm2015, %v2097, %v2096
    %v2099 = vsub.s32 4, %v2075
    %v2100 = vsel %vm2015, %v2099, %v2075
    %v2101 = vsel %vm2014, %v238, %v2098
    %v2102 = vsel %vm2014, 0, %v2100
    %v2103 = vcosq.f32.pop %v2101
    %v2104 = vsinq.f32.pop %v2101
    %vm2105 = vweird.f32 %v238
    %v2106 = vadd.s32 %v2102, 3
    %v2107 = vand.u32 %v2106, 3
    %vm2108 = vcmp.lt.s32.totalorder %v2107, 2
    %vm2109 = vcmp.eq.s32.totalorder %v2107, 0
    %v2110 = vxor.u32 %v2104, 2147483648
    %v2111 = vsel %vm2109, %v2103, %v2110
    %vm2112 = vcmp.eq.s32.totalorder %v2107, 2
    %v2113 = vxor.u32 %v2103, 2147483648
    %v2114 = vsel %vm2112, %v2113, %v2104
    %v2115 = vsel %vm2108, %v2111, %v2114
    %v2116 = vsel %vm2105, nan, %v2115
    %v2117 = vand.u32 2147483647, %v239
    %vm2118 = vcmp.le.f32.partialorder %v2117, 0.7853982
    %vm2119 = vcmp.lt.s32.totalorder %v239, 0
    %v2120 = vand.u32 %v239, 2139095040
    %v2121 = vshrl.u32 %v2120, 23
    %v2122 = vsub.s32 %v2121, 127
    %v2123 = vand.u32 2147483647, %v239
    %v2124 = vand.u32 %v2123, 8388607
    %v2125 = vor.u32 %v2124, 8388608
    %v2126 = vsub.s32 0, %v2125
    %v2127 = vadd.s32 %v2122, 1
    %vm2128 = vcmp.gt.s32.totalorder %v2127, 0
    %v2129 = vsel %vm2128, %v2127, 0
    %v2130 = vshrl.u32 %v2129, 5
    %v2131 = vand.u32 %v2129, 31
    %v2132 = vsub.s32 32, %v2131
    %v2133 = vshrl.u32 683565275, %v2132
    %v2134 = vshll.u32 683565275, %v2131
    %v2135 = vshrl.u32 2475754826, %v2132
    %v2136 = vor.u32 %v2134, %v2135
    %v2137 = vshll.u32 2475754826, %v2131
    %v2138 = vshrl.u32 2131351028, %v2132
    %v2139 = vor.u32 %v2137, %v2138
    %v2140 = vshll.u32 2131351028, %v2131
    %v2141 = vshrl.u32 2102212464, %v2132
    %v2142 = vor.u32 %v2140, %v2141
    %v2143 = vshll.u32 2102212464, %v2131
    %v2144 = vshrl.u32 920167782, %v2132
    %v2145 = vor.u32 %v2143, %v2144
    %v2146 = vshll.u32 920167782, %v2131
    %v2147 = vshrl.u32 1326507024, %v2132
    %v2148 = vor.u32 %v2146, %v2147
    %vm2149 = vcmp.lt.s32.totalorder %v2130, 1
    %vm2150 = vcmp.lt.s32.totalorder %v2130, 2
    %vm2151 = vcmp.lt.s32.totalorder %v2130, 3
    %vm2152 = vcmp.lt.s32.totalorder %v2130, 4
    %v2153 = vsel %vm2149, %v2133, %v2136
    %v2154 = vsel %vm2152, %v2142, 2102212464
    %v2155 = vsel %vm2151, %v2139, %v2154
    %v2156 = vsel %vm2150, %v2153, %v2155
    %v2157 = vsel %vm2149, %v2136, %v2139
    %v2158 = vsel %vm2152, %v2145, 920167782
    %v2159 = vsel %vm2151, %v2142, %v2158
    %v2160 = vsel %vm2150, %v2157, %v2159
    %v2161 = vsel %vm2149, %v2139, %v2142
    %v2162 = vsel %vm2152, %v2148, 1326507024
    %v2163 = vsel %vm2151, %v2145, %v2162
    %v2164 = vsel %vm2150, %v2161, %v2163
    %v2165 = vshll.u32 %v2125, 8
    %v2166 = vmul.u32.u64.compose %v2165, %v2164
    %v2167 = vextract.low.u32 %v2166
    %v2168 = vextract.high.u32 %v2166
    %v2169 = vmul.u32.u64.compose %v2165, %v2160
    %v2170 = vextract.low.u32 %v2169
    %v2171 = vextract.high.u32 %v2169
    %v2172 = vmul.u32 %v2165, %v2156
    %v2173 = vadd.s32 %v2168, %v2170
    %vm2174 = vc.u32 %v2168, %v2170
    %v2175 = vadd.s32 %v2171, 1
    %v2176 = vsel %vm2174, %v2175, %v2171
    %v2177 = vadd.s32 %v2172, %v2176
    %v2178 = vadd.s32 %v2177, 536870912
    %v2179 = vshrl.u32 %v2178, 30
    %v2180 = vshll.u32 %v2179, 30
    %v2181 = vsub.s32 %v2177, %v2180
    %vm2182 = vcmp.lt.s32.totalorder %v2181, 0
    %v2183 = vsub.s32 0, %v2181
    %v2184 = vsel %vm2182, %v2183, %v2181
    %v2185 = vclz %v2184
    %v2186 = vsub.s32 %v2185, 2
    %vm2187 = vcmp.gt.s32.totalorder 0, %v2186
    %v2188 = vsel %vm2187, 0, %v2186
    %v2189 = vsub.s32 32, %v2188
    %v2190 = vshll.u32 %v2181, %v2188
    %v2191 = vshrl.u32 %v2173, %v2189
    %v2192 = vor.u32 %v2190, %v2191
    %v2193 = vsub.s32 4294967266, %v2188
    %v2194 = vadd.s32 %v2193, 127
    %v2195 = vshll.u32 %v2194, 23
    %v2196 = vor.u32 4788187, %v2195
    %v2197 = vand.u32 2147483647, %v2196
    %v2199 = vcvt.s32.f32 %v2192
    %v2200 = vmul.f32 %v2199, %v2197
    %v2201 = vxor.u32 %v2200, 2147483648
    %v2202 = vsel %vm2119, %v2201, %v2200
    %v2203 = vsub.s32 4, %v2179
    %v2204 = vsel %vm2119, %v2203, %v2179
    %v2205 = vsel %vm2118, %v239, %v2202
    %v2206 = vsel %vm2118, 0, %v2204
    %v2207 = vcosq.f32.pop %v2205
    %v2208 = vsinq.f32.pop %v2205
    %vm2209 = vweird.f32 %v239
    %v2210 = vadd.s32 %v2206, 3
    %v2211 = vand.u32 %v2210, 3
    %vm2212 = vcmp.lt.s32.totalorder %v2211, 2
    %vm2213 = vcmp.eq.s32.totalorder %v2211, 0
    %v2214 = vxor.u32 %v2208, 2147483648
    %v2215 = vsel %vm2213, %v2207, %v2214
    %vm2216 = vcmp.eq.s32.totalorder %v2211, 2
    %v2217 = vxor.u32 %v2207, 2147483648
    %v2218 = vsel %vm2216, %v2217, %v2208
    %v2219 = vsel %vm2212, %v2215, %v2218
    %v2220 = vsel %vm2209, nan, %v2219
    %v2221 = vand.u32 2147483647, %v240
    %vm2222 = vcmp.le.f32.partialorder %v2221, 0.7853982
    %vm2223 = vcmp.lt.s32.totalorder %v240, 0
    %v2224 = vand.u32 %v240, 2139095040
    %v2225 = vshrl.u32 %v2224, 23
    %v2226 = vsub.s32 %v2225, 127
    %v2227 = vand.u32 2147483647, %v240
    %v2228 = vand.u32 %v2227, 8388607
    %v2229 = vor.u32 %v2228, 8388608
    %v2230 = vsub.s32 0, %v2229
    %v2231 = vadd.s32 %v2226, 1
    %vm2232 = vcmp.gt.s32.totalorder %v2231, 0
    %v2233 = vsel %vm2232, %v2231, 0
    %v2234 = vshrl.u32 %v2233, 5
    %v2235 = vand.u32 %v2233, 31
    %v2236 = vsub.s32 32, %v2235
    %v2237 = vshrl.u32 683565275, %v2236
    %v2238 = vshll.u32 683565275, %v2235
    %v2239 = vshrl.u32 2475754826, %v2236
    %v2240 = vor.u32 %v2238, %v2239
    %v2241 = vshll.u32 2475754826, %v2235
    %v2242 = vshrl.u32 2131351028, %v2236
    %v2243 = vor.u32 %v2241, %v2242
    %v2244 = vshll.u32 2131351028, %v2235
    %v2245 = vshrl.u32 2102212464, %v2236
    %v2246 = vor.u32 %v2244, %v2245
    %v2247 = vshll.u32 2102212464, %v2235
    %v2248 = vshrl.u32 920167782, %v2236
    %v2249 = vor.u32 %v2247, %v2248
    %v2250 = vshll.u32 920167782, %v2235
    %v2251 = vshrl.u32 1326507024, %v2236
    %v2252 = vor.u32 %v2250, %v2251
    %vm2253 = vcmp.lt.s32.totalorder %v2234, 1
    %vm2254 = vcmp.lt.s32.totalorder %v2234, 2
    %vm2255 = vcmp.lt.s32.totalorder %v2234, 3
    %vm2256 = vcmp.lt.s32.totalorder %v2234, 4
    %v2257 = vsel %vm2253, %v2237, %v2240
    %v2258 = vsel %vm2256, %v2246, 2102212464
    %v2259 = vsel %vm2255, %v2243, %v2258
    %v2260 = vsel %vm2254, %v2257, %v2259
    %v2261 = vsel %vm2253, %v2240, %v2243
    %v2262 = vsel %vm2256, %v2249, 920167782
    %v2263 = vsel %vm2255, %v2246, %v2262
    %v2264 = vsel %vm2254, %v2261, %v2263
    %v2265 = vsel %vm2253, %v2243, %v2246
    %v2266 = vsel %vm2256, %v2252, 1326507024
    %v2267 = vsel %vm2255, %v2249, %v2266
    %v2268 = vsel %vm2254, %v2265, %v2267
    %v2269 = vshll.u32 %v2229, 8
    %v2270 = vmul.u32.u64.compose %v2269, %v2268
    %v2271 = vextract.low.u32 %v2270
    %v2272 = vextract.high.u32 %v2270
    %v2273 = vmul.u32.u64.compose %v2269, %v2264
    %v2274 = vextract.low.u32 %v2273
    %v2275 = vextract.high.u32 %v2273
    %v2276 = vmul.u32 %v2269, %v2260
    %v2277 = vadd.s32 %v2272, %v2274
    %vm2278 = vc.u32 %v2272, %v2274
    %v2279 = vadd.s32 %v2275, 1
    %v2280 = vsel %vm2278, %v2279, %v2275
    %v2281 = vadd.s32 %v2276, %v2280
    %v2282 = vadd.s32 %v2281, 536870912
    %v2283 = vshrl.u32 %v2282, 30
    %v2284 = vshll.u32 %v2283, 30
    %v2285 = vsub.s32 %v2281, %v2284
    %vm2286 = vcmp.lt.s32.totalorder %v2285, 0
    %v2287 = vsub.s32 0, %v2285
    %v2288 = vsel %vm2286, %v2287, %v2285
    %v2289 = vclz %v2288
    %v2290 = vsub.s32 %v2289, 2
    %vm2291 = vcmp.gt.s32.totalorder 0, %v2290
    %v2292 = vsel %vm2291, 0, %v2290
    %v2293 = vsub.s32 32, %v2292
    %v2294 = vshll.u32 %v2285, %v2292
    %v2295 = vshrl.u32 %v2277, %v2293
    %v2296 = vor.u32 %v2294, %v2295
    %v2297 = vsub.s32 4294967266, %v2292
    %v2298 = vadd.s32 %v2297, 127
    %v2299 = vshll.u32 %v2298, 23
    %v2300 = vor.u32 4788187, %v2299
    %v2301 = vand.u32 2147483647, %v2300
    %v2303 = vcvt.s32.f32 %v2296
    %v2304 = vmul.f32 %v2303, %v2301
    %v2305 = vxor.u32 %v2304, 2147483648
    %v2306 = vsel %vm2223, %v2305, %v2304
    %v2307 = vsub.s32 4, %v2283
    %v2308 = vsel %vm2223, %v2307, %v2283
    %v2309 = vsel %vm2222, %v240, %v2306
    %v2310 = vsel %vm2222, 0, %v2308
    %v2311 = vcosq.f32.pop %v2309
    %v2312 = vsinq.f32.pop %v2309
    %vm2313 = vweird.f32 %v240
    %v2314 = vadd.s32 %v2310, 3
    %v2315 = vand.u32 %v2314, 3
    %vm2316 = vcmp.lt.s32.totalorder %v2315, 2
    %vm2317 = vcmp.eq.s32.totalorder %v2315, 0
    %v2318 = vxor.u32 %v2312, 2147483648
    %v2319 = vsel %vm2317, %v2311, %v2318
    %vm2320 = vcmp.eq.s32.totalorder %v2315, 2
    %v2321 = vxor.u32 %v2311, 2147483648
    %v2322 = vsel %vm2320, %v2321, %v2312
    %v2323 = vsel %vm2316, %v2319, %v2322
    %v2324 = vsel %vm2313, nan, %v2323
    %v2325 = vand.u32 2147483647, %v241
    %vm2326 = vcmp.le.f32.partialorder %v2325, 0.7853982
    %vm2327 = vcmp.lt.s32.totalorder %v241, 0
    %v2328 = vand.u32 %v241, 2139095040
    %v2329 = vshrl.u32 %v2328, 23
    %v2330 = vsub.s32 %v2329, 127
    %v2331 = vand.u32 2147483647, %v241
    %v2332 = vand.u32 %v2331, 8388607
    %v2333 = vor.u32 %v2332, 8388608
    %v2334 = vsub.s32 0, %v2333
    %v2335 = vadd.s32 %v2330, 1
    %vm2336 = vcmp.gt.s32.totalorder %v2335, 0
    %v2337 = vsel %vm2336, %v2335, 0
    %v2338 = vshrl.u32 %v2337, 5
    %v2339 = vand.u32 %v2337, 31
    %v2340 = vsub.s32 32, %v2339
    %v2341 = vshrl.u32 683565275, %v2340
    %v2342 = vshll.u32 683565275, %v2339
    %v2343 = vshrl.u32 2475754826, %v2340
    %v2344 = vor.u32 %v2342, %v2343
    %v2345 = vshll.u32 2475754826, %v2339
    %v2346 = vshrl.u32 2131351028, %v2340
    %v2347 = vor.u32 %v2345, %v2346
    %v2348 = vshll.u32 2131351028, %v2339
    %v2349 = vshrl.u32 2102212464, %v2340
    %v2350 = vor.u32 %v2348, %v2349
    %v2351 = vshll.u32 2102212464, %v2339
    %v2352 = vshrl.u32 920167782, %v2340
    %v2353 = vor.u32 %v2351, %v2352
    %v2354 = vshll.u32 920167782, %v2339
    %v2355 = vshrl.u32 1326507024, %v2340
    %v2356 = vor.u32 %v2354, %v2355
    %vm2357 = vcmp.lt.s32.totalorder %v2338, 1
    %vm2358 = vcmp.lt.s32.totalorder %v2338, 2
    %vm2359 = vcmp.lt.s32.totalorder %v2338, 3
    %vm2360 = vcmp.lt.s32.totalorder %v2338, 4
    %v2361 = vsel %vm2357, %v2341, %v2344
    %v2362 = vsel %vm2360, %v2350, 2102212464
    %v2363 = vsel %vm2359, %v2347, %v2362
    %v2364 = vsel %vm2358, %v2361, %v2363
    %v2365 = vsel %vm2357, %v2344, %v2347
    %v2366 = vsel %vm2360, %v2353, 920167782
    %v2367 = vsel %vm2359, %v2350, %v2366
    %v2368 = vsel %vm2358, %v2365, %v2367
    %v2369 = vsel %vm2357, %v2347, %v2350
    %v2370 = vsel %vm2360, %v2356, 1326507024
    %v2371 = vsel %vm2359, %v2353, %v2370
    %v2372 = vsel %vm2358, %v2369, %v2371
    %v2373 = vshll.u32 %v2333, 8
    %v2374 = vmul.u32.u64.compose %v2373, %v2372
    %v2375 = vextract.low.u32 %v2374
    %v2376 = vextract.high.u32 %v2374
    %v2377 = vmul.u32.u64.compose %v2373, %v2368
    %v2378 = vextract.low.u32 %v2377
    %v2379 = vextract.high.u32 %v2377
    %v2380 = vmul.u32 %v2373, %v2364
    %v2381 = vadd.s32 %v2376, %v2378
    %vm2382 = vc.u32 %v2376, %v2378
    %v2383 = vadd.s32 %v2379, 1
    %v2384 = vsel %vm2382, %v2383, %v2379
    %v2385 = vadd.s32 %v2380, %v2384
    %v2386 = vadd.s32 %v2385, 536870912
    %v2387 = vshrl.u32 %v2386, 30
    %v2388 = vshll.u32 %v2387, 30
    %v2389 = vsub.s32 %v2385, %v2388
    %vm2390 = vcmp.lt.s32.totalorder %v2389, 0
    %v2391 = vsub.s32 0, %v2389
    %v2392 = vsel %vm2390, %v2391, %v2389
    %v2393 = vclz %v2392
    %v2394 = vsub.s32 %v2393, 2
    %vm2395 = vcmp.gt.s32.totalorder 0, %v2394
    %v2396 = vsel %vm2395, 0, %v2394
    %v2397 = vsub.s32 32, %v2396
    %v2398 = vshll.u32 %v2389, %v2396
    %v2399 = vshrl.u32 %v2381, %v2397
    %v2400 = vor.u32 %v2398, %v2399
    %v2401 = vsub.s32 4294967266, %v2396
    %v2402 = vadd.s32 %v2401, 127
    %v2403 = vshll.u32 %v2402, 23
    %v2404 = vor.u32 4788187, %v2403
    %v2405 = vand.u32 2147483647, %v2404
    %v2407 = vcvt.s32.f32 %v2400
    %v2408 = vmul.f32 %v2407, %v2405
    %v2409 = vxor.u32 %v2408, 2147483648
    %v2410 = vsel %vm2327, %v2409, %v2408
    %v2411 = vsub.s32 4, %v2387
    %v2412 = vsel %vm2327, %v2411, %v2387
    %v2413 = vsel %vm2326, %v241, %v2410
    %v2414 = vsel %vm2326, 0, %v2412
    %v2415 = vcosq.f32.pop %v2413
    %v2416 = vsinq.f32.pop %v2413
    %vm2417 = vweird.f32 %v241
    %v2418 = vadd.s32 %v2414, 3
    %v2419 = vand.u32 %v2418, 3
    %vm2420 = vcmp.lt.s32.totalorder %v2419, 2
    %vm2421 = vcmp.eq.s32.totalorder %v2419, 0
    %v2422 = vxor.u32 %v2416, 2147483648
    %v2423 = vsel %vm2421, %v2415, %v2422
    %vm2424 = vcmp.eq.s32.totalorder %v2419, 2
    %v2425 = vxor.u32 %v2415, 2147483648
    %v2426 = vsel %vm2424, %v2425, %v2416
    %v2427 = vsel %vm2420, %v2423, %v2426
    %v2428 = vsel %vm2417, nan, %v2427
    %v2429 = vand.u32 2147483647, %v242
    %vm2430 = vcmp.le.f32.partialorder %v2429, 0.7853982
    %vm2431 = vcmp.lt.s32.totalorder %v242, 0
    %v2432 = vand.u32 %v242, 2139095040
    %v2433 = vshrl.u32 %v2432, 23
    %v2434 = vsub.s32 %v2433, 127
    %v2435 = vand.u32 2147483647, %v242
    %v2436 = vand.u32 %v2435, 8388607
    %v2437 = vor.u32 %v2436, 8388608
    %v2438 = vsub.s32 0, %v2437
    %v2439 = vadd.s32 %v2434, 1
    %vm2440 = vcmp.gt.s32.totalorder %v2439, 0
    %v2441 = vsel %vm2440, %v2439, 0
    %v2442 = vshrl.u32 %v2441, 5
    %v2443 = vand.u32 %v2441, 31
    %v2444 = vsub.s32 32, %v2443
    %v2445 = vshrl.u32 683565275, %v2444
    %v2446 = vshll.u32 683565275, %v2443
    %v2447 = vshrl.u32 2475754826, %v2444
    %v2448 = vor.u32 %v2446, %v2447
    %v2449 = vshll.u32 2475754826, %v2443
    %v2450 = vshrl.u32 2131351028, %v2444
    %v2451 = vor.u32 %v2449, %v2450
    %v2452 = vshll.u32 2131351028, %v2443
    %v2453 = vshrl.u32 2102212464, %v2444
    %v2454 = vor.u32 %v2452, %v2453
    %v2455 = vshll.u32 2102212464, %v2443
    %v2456 = vshrl.u32 920167782, %v2444
    %v2457 = vor.u32 %v2455, %v2456
    %v2458 = vshll.u32 920167782, %v2443
    %v2459 = vshrl.u32 1326507024, %v2444
    %v2460 = vor.u32 %v2458, %v2459
    %vm2461 = vcmp.lt.s32.totalorder %v2442, 1
    %vm2462 = vcmp.lt.s32.totalorder %v2442, 2
    %vm2463 = vcmp.lt.s32.totalorder %v2442, 3
    %vm2464 = vcmp.lt.s32.totalorder %v2442, 4
    %v2465 = vsel %vm2461, %v2445, %v2448
    %v2466 = vsel %vm2464, %v2454, 2102212464
    %v2467 = vsel %vm2463, %v2451, %v2466
    %v2468 = vsel %vm2462, %v2465, %v2467
    %v2469 = vsel %vm2461, %v2448, %v2451
    %v2470 = vsel %vm2464, %v2457, 920167782
    %v2471 = vsel %vm2463, %v2454, %v2470
    %v2472 = vsel %vm2462, %v2469, %v2471
    %v2473 = vsel %vm2461, %v2451, %v2454
    %v2474 = vsel %vm2464, %v2460, 1326507024
    %v2475 = vsel %vm2463, %v2457, %v2474
    %v2476 = vsel %vm2462, %v2473, %v2475
    %v2477 = vshll.u32 %v2437, 8
    %v2478 = vmul.u32.u64.compose %v2477, %v2476
    %v2479 = vextract.low.u32 %v2478
    %v2480 = vextract.high.u32 %v2478
    %v2481 = vmul.u32.u64.compose %v2477, %v2472
    %v2482 = vextract.low.u32 %v2481
    %v2483 = vextract.high.u32 %v2481
    %v2484 = vmul.u32 %v2477, %v2468
    %v2485 = vadd.s32 %v2480, %v2482
    %vm2486 = vc.u32 %v2480, %v2482
    %v2487 = vadd.s32 %v2483, 1
    %v2488 = vsel %vm2486, %v2487, %v2483
    %v2489 = vadd.s32 %v2484, %v2488
    %v2490 = vadd.s32 %v2489, 536870912
    %v2491 = vshrl.u32 %v2490, 30
    %v2492 = vshll.u32 %v2491, 30
    %v2493 = vsub.s32 %v2489, %v2492
    %vm2494 = vcmp.lt.s32.totalorder %v2493, 0
    %v2495 = vsub.s32 0, %v2493
    %v2496 = vsel %vm2494, %v2495, %v2493
    %v2497 = vclz %v2496
    %v2498 = vsub.s32 %v2497, 2
    %vm2499 = vcmp.gt.s32.totalorder 0, %v2498
    %v2500 = vsel %vm2499, 0, %v2498
    %v2501 = vsub.s32 32, %v2500
    %v2502 = vshll.u32 %v2493, %v2500
    %v2503 = vshrl.u32 %v2485, %v2501
    %v2504 = vor.u32 %v2502, %v2503
    %v2505 = vsub.s32 4294967266, %v2500
    %v2506 = vadd.s32 %v2505, 127
    %v2507 = vshll.u32 %v2506, 23
    %v2508 = vor.u32 4788187, %v2507
    %v2509 = vand.u32 2147483647, %v2508
    %v2511 = vcvt.s32.f32 %v2504
    %v2512 = vmul.f32 %v2511, %v2509
    %v2513 = vxor.u32 %v2512, 2147483648
    %v2514 = vsel %vm2431, %v2513, %v2512
    %v2515 = vsub.s32 4, %v2491
    %v2516 = vsel %vm2431, %v2515, %v2491
    %v2517 = vsel %vm2430, %v242, %v2514
    %v2518 = vsel %vm2430, 0, %v2516
    %v2519 = vcosq.f32.pop %v2517
    %v2520 = vsinq.f32.pop %v2517
    %vm2521 = vweird.f32 %v242
    %v2522 = vadd.s32 %v2518, 3
    %v2523 = vand.u32 %v2522, 3
    %vm2524 = vcmp.lt.s32.totalorder %v2523, 2
    %vm2525 = vcmp.eq.s32.totalorder %v2523, 0
    %v2526 = vxor.u32 %v2520, 2147483648
    %v2527 = vsel %vm2525, %v2519, %v2526
    %vm2528 = vcmp.eq.s32.totalorder %v2523, 2
    %v2529 = vxor.u32 %v2519, 2147483648
    %v2530 = vsel %vm2528, %v2529, %v2520
    %v2531 = vsel %vm2524, %v2527, %v2530
    %v2532 = vsel %vm2521, nan, %v2531
    %v2533 = vand.u32 2147483647, %v243
    %vm2534 = vcmp.le.f32.partialorder %v2533, 0.7853982
    %vm2535 = vcmp.lt.s32.totalorder %v243, 0
    %v2536 = vand.u32 %v243, 2139095040
    %v2537 = vshrl.u32 %v2536, 23
    %v2538 = vsub.s32 %v2537, 127
    %v2539 = vand.u32 2147483647, %v243
    %v2540 = vand.u32 %v2539, 8388607
    %v2541 = vor.u32 %v2540, 8388608
    %v2542 = vsub.s32 0, %v2541
    %v2543 = vadd.s32 %v2538, 1
    %vm2544 = vcmp.gt.s32.totalorder %v2543, 0
    %v2545 = vsel %vm2544, %v2543, 0
    %v2546 = vshrl.u32 %v2545, 5
    %v2547 = vand.u32 %v2545, 31
    %v2548 = vsub.s32 32, %v2547
    %v2549 = vshrl.u32 683565275, %v2548
    %v2550 = vshll.u32 683565275, %v2547
    %v2551 = vshrl.u32 2475754826, %v2548
    %v2552 = vor.u32 %v2550, %v2551
    %v2553 = vshll.u32 2475754826, %v2547
    %v2554 = vshrl.u32 2131351028, %v2548
    %v2555 = vor.u32 %v2553, %v2554
    %v2556 = vshll.u32 2131351028, %v2547
    %v2557 = vshrl.u32 2102212464, %v2548
    %v2558 = vor.u32 %v2556, %v2557
    %v2559 = vshll.u32 2102212464, %v2547
    %v2560 = vshrl.u32 920167782, %v2548
    %v2561 = vor.u32 %v2559, %v2560
    %v2562 = vshll.u32 920167782, %v2547
    %v2563 = vshrl.u32 1326507024, %v2548
    %v2564 = vor.u32 %v2562, %v2563
    %vm2565 = vcmp.lt.s32.totalorder %v2546, 1
    %vm2566 = vcmp.lt.s32.totalorder %v2546, 2
    %vm2567 = vcmp.lt.s32.totalorder %v2546, 3
    %vm2568 = vcmp.lt.s32.totalorder %v2546, 4
    %v2569 = vsel %vm2565, %v2549, %v2552
    %v2570 = vsel %vm2568, %v2558, 2102212464
    %v2571 = vsel %vm2567, %v2555, %v2570
    %v2572 = vsel %vm2566, %v2569, %v2571
    %v2573 = vsel %vm2565, %v2552, %v2555
    %v2574 = vsel %vm2568, %v2561, 920167782
    %v2575 = vsel %vm2567, %v2558, %v2574
    %v2576 = vsel %vm2566, %v2573, %v2575
    %v2577 = vsel %vm2565, %v2555, %v2558
    %v2578 = vsel %vm2568, %v2564, 1326507024
    %v2579 = vsel %vm2567, %v2561, %v2578
    %v2580 = vsel %vm2566, %v2577, %v2579
    %v2581 = vshll.u32 %v2541, 8
    %v2582 = vmul.u32.u64.compose %v2581, %v2580
    %v2583 = vextract.low.u32 %v2582
    %v2584 = vextract.high.u32 %v2582
    %v2585 = vmul.u32.u64.compose %v2581, %v2576
    %v2586 = vextract.low.u32 %v2585
    %v2587 = vextract.high.u32 %v2585
    %v2588 = vmul.u32 %v2581, %v2572
    %v2589 = vadd.s32 %v2584, %v2586
    %vm2590 = vc.u32 %v2584, %v2586
    %v2591 = vadd.s32 %v2587, 1
    %v2592 = vsel %vm2590, %v2591, %v2587
    %v2593 = vadd.s32 %v2588, %v2592
    %v2594 = vadd.s32 %v2593, 536870912
    %v2595 = vshrl.u32 %v2594, 30
    %v2596 = vshll.u32 %v2595, 30
    %v2597 = vsub.s32 %v2593, %v2596
    %vm2598 = vcmp.lt.s32.totalorder %v2597, 0
    %v2599 = vsub.s32 0, %v2597
    %v2600 = vsel %vm2598, %v2599, %v2597
    %v2601 = vclz %v2600
    %v2602 = vsub.s32 %v2601, 2
    %vm2603 = vcmp.gt.s32.totalorder 0, %v2602
    %v2604 = vsel %vm2603, 0, %v2602
    %v2605 = vsub.s32 32, %v2604
    %v2606 = vshll.u32 %v2597, %v2604
    %v2607 = vshrl.u32 %v2589, %v2605
    %v2608 = vor.u32 %v2606, %v2607
    %v2609 = vsub.s32 4294967266, %v2604
    %v2610 = vadd.s32 %v2609, 127
    %v2611 = vshll.u32 %v2610, 23
    %v2612 = vor.u32 4788187, %v2611
    %v2613 = vand.u32 2147483647, %v2612
    %v2615 = vcvt.s32.f32 %v2608
    %v2616 = vmul.f32 %v2615, %v2613
    %v2617 = vxor.u32 %v2616, 2147483648
    %v2618 = vsel %vm2535, %v2617, %v2616
    %v2619 = vsub.s32 4, %v2595
    %v2620 = vsel %vm2535, %v2619, %v2595
    %v2621 = vsel %vm2534, %v243, %v2618
    %v2622 = vsel %vm2534, 0, %v2620
    %v2623 = vcosq.f32.pop %v2621
    %v2624 = vsinq.f32.pop %v2621
    %vm2625 = vweird.f32 %v243
    %v2626 = vadd.s32 %v2622, 3
    %v2627 = vand.u32 %v2626, 3
    %vm2628 = vcmp.lt.s32.totalorder %v2627, 2
    %vm2629 = vcmp.eq.s32.totalorder %v2627, 0
    %v2630 = vxor.u32 %v2624, 2147483648
    %v2631 = vsel %vm2629, %v2623, %v2630
    %vm2632 = vcmp.eq.s32.totalorder %v2627, 2
    %v2633 = vxor.u32 %v2623, 2147483648
    %v2634 = vsel %vm2632, %v2633, %v2624
    %v2635 = vsel %vm2628, %v2631, %v2634
    %v2636 = vsel %vm2625, nan, %v2635
    %v2637 = vand.u32 2147483647, %v244
    %vm2638 = vcmp.le.f32.partialorder %v2637, 0.7853982
    %vm2639 = vcmp.lt.s32.totalorder %v244, 0
    %v2640 = vand.u32 %v244, 2139095040
    %v2641 = vshrl.u32 %v2640, 23
    %v2642 = vsub.s32 %v2641, 127
    %v2643 = vand.u32 2147483647, %v244
    %v2644 = vand.u32 %v2643, 8388607
    %v2645 = vor.u32 %v2644, 8388608
    %v2646 = vsub.s32 0, %v2645
    %v2647 = vadd.s32 %v2642, 1
    %vm2648 = vcmp.gt.s32.totalorder %v2647, 0
    %v2649 = vsel %vm2648, %v2647, 0
    %v2650 = vshrl.u32 %v2649, 5
    %v2651 = vand.u32 %v2649, 31
    %v2652 = vsub.s32 32, %v2651
    %v2653 = vshrl.u32 683565275, %v2652
    %v2654 = vshll.u32 683565275, %v2651
    %v2655 = vshrl.u32 2475754826, %v2652
    %v2656 = vor.u32 %v2654, %v2655
    %v2657 = vshll.u32 2475754826, %v2651
    %v2658 = vshrl.u32 2131351028, %v2652
    %v2659 = vor.u32 %v2657, %v2658
    %v2660 = vshll.u32 2131351028, %v2651
    %v2661 = vshrl.u32 2102212464, %v2652
    %v2662 = vor.u32 %v2660, %v2661
    %v2663 = vshll.u32 2102212464, %v2651
    %v2664 = vshrl.u32 920167782, %v2652
    %v2665 = vor.u32 %v2663, %v2664
    %v2666 = vshll.u32 920167782, %v2651
    %v2667 = vshrl.u32 1326507024, %v2652
    %v2668 = vor.u32 %v2666, %v2667
    %vm2669 = vcmp.lt.s32.totalorder %v2650, 1
    %vm2670 = vcmp.lt.s32.totalorder %v2650, 2
    %vm2671 = vcmp.lt.s32.totalorder %v2650, 3
    %vm2672 = vcmp.lt.s32.totalorder %v2650, 4
    %v2673 = vsel %vm2669, %v2653, %v2656
    %v2674 = vsel %vm2672, %v2662, 2102212464
    %v2675 = vsel %vm2671, %v2659, %v2674
    %v2676 = vsel %vm2670, %v2673, %v2675
    %v2677 = vsel %vm2669, %v2656, %v2659
    %v2678 = vsel %vm2672, %v2665, 920167782
    %v2679 = vsel %vm2671, %v2662, %v2678
    %v2680 = vsel %vm2670, %v2677, %v2679
    %v2681 = vsel %vm2669, %v2659, %v2662
    %v2682 = vsel %vm2672, %v2668, 1326507024
    %v2683 = vsel %vm2671, %v2665, %v2682
    %v2684 = vsel %vm2670, %v2681, %v2683
    %v2685 = vshll.u32 %v2645, 8
    %v2686 = vmul.u32.u64.compose %v2685, %v2684
    %v2687 = vextract.low.u32 %v2686
    %v2688 = vextract.high.u32 %v2686
    %v2689 = vmul.u32.u64.compose %v2685, %v2680
    %v2690 = vextract.low.u32 %v2689
    %v2691 = vextract.high.u32 %v2689
    %v2692 = vmul.u32 %v2685, %v2676
    %v2693 = vadd.s32 %v2688, %v2690
    %vm2694 = vc.u32 %v2688, %v2690
    %v2695 = vadd.s32 %v2691, 1
    %v2696 = vsel %vm2694, %v2695, %v2691
    %v2697 = vadd.s32 %v2692, %v2696
    %v2698 = vadd.s32 %v2697, 536870912
    %v2699 = vshrl.u32 %v2698, 30
    %v2700 = vshll.u32 %v2699, 30
    %v2701 = vsub.s32 %v2697, %v2700
    %vm2702 = vcmp.lt.s32.totalorder %v2701, 0
    %v2703 = vsub.s32 0, %v2701
    %v2704 = vsel %vm2702, %v2703, %v2701
    %v2705 = vclz %v2704
    %v2706 = vsub.s32 %v2705, 2
    %vm2707 = vcmp.gt.s32.totalorder 0, %v2706
    %v2708 = vsel %vm2707, 0, %v2706
    %v2709 = vsub.s32 32, %v2708
    %v2710 = vshll.u32 %v2701, %v2708
    %v2711 = vshrl.u32 %v2693, %v2709
    %v2712 = vor.u32 %v2710, %v2711
    %v2713 = vsub.s32 4294967266, %v2708
    %v2714 = vadd.s32 %v2713, 127
    %v2715 = vshll.u32 %v2714, 23
    %v2716 = vor.u32 4788187, %v2715
    %v2717 = vand.u32 2147483647, %v2716
    %v2719 = vcvt.s32.f32 %v2712
    %v2720 = vmul.f32 %v2719, %v2717
    %v2721 = vxor.u32 %v2720, 2147483648
    %v2722 = vsel %vm2639, %v2721, %v2720
    %v2723 = vsub.s32 4, %v2699
    %v2724 = vsel %vm2639, %v2723, %v2699
    %v2725 = vsel %vm2638, %v244, %v2722
    %v2726 = vsel %vm2638, 0, %v2724
    %v2727 = vcosq.f32.pop %v2725
    %v2728 = vsinq.f32.pop %v2725
    %vm2729 = vweird.f32 %v244
    %v2730 = vadd.s32 %v2726, 3
    %v2731 = vand.u32 %v2730, 3
    %vm2732 = vcmp.lt.s32.totalorder %v2731, 2
    %vm2733 = vcmp.eq.s32.totalorder %v2731, 0
    %v2734 = vxor.u32 %v2728, 2147483648
    %v2735 = vsel %vm2733, %v2727, %v2734
    %vm2736 = vcmp.eq.s32.totalorder %v2731, 2
    %v2737 = vxor.u32 %v2727, 2147483648
    %v2738 = vsel %vm2736, %v2737, %v2728
    %v2739 = vsel %vm2732, %v2735, %v2738
    %v2740 = vsel %vm2729, nan, %v2739
    %v2741 = vld [vmem:[%s1 + $0x60] sm:$0xff]
    %v2742 = vld [vmem:[%s1 + $0x68] sm:$0xff]
    %v2743 = vld [vmem:[%s1 + $0x70] sm:$0xff]
    %v2744 = vld [vmem:[%s1 + $0x78] sm:$0xff]
    %v2745 = vld [vmem:[%s2] sm:$0xff]
    %v2746 = vld [vmem:[%s2 + $0x8] sm:$0xff]
    %v2747 = vld [vmem:[%s2 + $0x10] sm:$0xff]
    %v2748 = vld [vmem:[%s2 + $0x18] sm:$0xff]
    %2750 = vset.pattern.permute.xlu0 0
    %2751 = vperm.xlu0 %2750, %v2745
    %v2752 = vpop.permute.xlu0 %2751
    %2755 = vset.pattern.permute.xlu0 0
    %2756 = vperm.xlu0 %2755, %v2746
    %v2757 = vpop.permute.xlu0 %2756
    %2760 = vset.pattern.permute.xlu0 0
    %2761 = vperm.xlu0 %2760, %v2747
    %v2762 = vpop.permute.xlu0 %2761
    %2765 = vset.pattern.permute.xlu0 0
    %2766 = vperm.xlu0 %2765, %v2748
    %v2767 = vpop.permute.xlu0 %2766
    %vm2769 = vcmask 261120
    %v2771 = vsel %vm2769, %v2741, 0
    %v2774 = vsel %vm2769, %v2742, 0
    %v2777 = vsel %vm2769, %v2743, 0
    %v2780 = vsel %vm2769, %v2744, 0
    %2782 = vmatprep.subr.mxu0 %v452
    %2783 = vmatpush1.msra.mxu0 %v348
    %2784 = vmatprep.subr.mxu0 %v660
    %2785 = vmatpush1.msra.mxu0 %v556
    %2786 = vmatprep.subr.mxu0 %v868
    %2787 = vmatpush1.msra.mxu0 %v764
    %2788 = vmatprep.subr.mxu0 %v1076
    %2789 = vmatpush1.msra.mxu0 %v972
    %2790 = vmatprep.subr.mxu0 0.0
    %2791 = vmatpush1.msra.mxu0 0.0
    %2792 = vmatprep.subr.mxu0 0.0
    %2793 = vmatpush1.msra.mxu0 0.0
    %2794 = vmatprep.subr.mxu0 0.0
    %2795 = vmatpush1.msra.mxu0 0.0
    %2796 = vmatprep.subr.mxu0 0.0
    %2797 = vmatpush1.msra.mxu0 0.0
    %2798 = vmatprep.subr.mxu0 0.0
    %2799 = vmatpush1.msra.mxu0 0.0
    %2800 = vmatprep.subr.mxu0 0.0
    %2801 = vmatpush1.msra.mxu0 0.0
    %2802 = vmatprep.subr.mxu0 0.0
    %2803 = vmatpush1.msra.mxu0 0.0
    %2804 = vmatprep.subr.mxu0 0.0
    %2805 = vmatpush1.msra.mxu0 0.0
    %2806 = vmatprep.subr.mxu0 0.0
    %2807 = vmatpush1.msra.mxu0 0.0
    %2808 = vmatprep.subr.mxu0 0.0
    %2809 = vmatpush1.msra.mxu0 0.0
    %2810 = vmatprep.subr.mxu0 0.0
    %2811 = vmatpush1.msra.mxu0 0.0
    %2812 = vmatprep.subr.mxu0 0.0
    %2813 = vmatpush1.msra.mxu0 0.0
    %2814 = vmatprep.subr.mxu0 0.0
    %2815 = vmatpush1.msra.mxu0 0.0
    %2816 = vmatprep.subr.mxu0 0.0
    %2817 = vmatpush1.msra.mxu0 0.0
    %2818 = vmatprep.subr.mxu0 0.0
    %2819 = vmatpush1.msra.mxu0 0.0
    %2820 = vmatprep.subr.mxu0 0.0
    %2821 = vmatpush1.msra.mxu0 0.0
    %2822 = vmatprep.subr.mxu0 0.0
    %2823 = vmatpush1.msra.mxu0 0.0
    %2824 = vmatprep.subr.mxu0 0.0
    %2825 = vmatpush1.msra.mxu0 0.0
    %2826 = vmatprep.subr.mxu0 0.0
    %2827 = vmatpush1.msra.mxu0 0.0
    %2828 = vmatprep.subr.mxu0 0.0
    %2829 = vmatpush1.msra.mxu0 0.0
    %2830 = vmatprep.subr.mxu0 0.0
    %2831 = vmatpush1.msra.mxu0 0.0
    %2832 = vmatprep.subr.mxu0 0.0
    %2833 = vmatpush1.msra.mxu0 0.0
    %2834 = vmatprep.subr.mxu0 0.0
    %2835 = vmatpush1.msra.mxu0 0.0
    %2836 = vmatprep.subr.mxu0 0.0
    %2837 = vmatpush1.msra.mxu0 0.0
    %2838 = vmatprep.subr.mxu0 0.0
    %2839 = vmatpush1.msra.mxu0 0.0
    %2840 = vmatprep.subr.mxu0 0.0
    %2841 = vmatpush1.msra.mxu0 0.0
    %2842 = vmatprep.subr.mxu0 0.0
    %2843 = vmatpush1.msra.mxu0 0.0
    %2844 = vmatprep.subr.mxu0 0.0
    %2845 = vmatpush1.msra.mxu0 0.0
    %2846 = vmatprep.mubr.f32.mxu0 0.0
    %2847 = vmatmul.mubr.f32.gmra.mrb[0].mxu0 %v2771
    %v2848 = vpop.f32.mrb[0].mxu0
    %v2849 = vadd.f32 %v2752, %v2848
    %v2850 = vpop.f32.mrb[0].mxu0
    %v2851 = vadd.f32 %v2752, %v2850
    %2852 = vmatprep.mubr.f32.mxu0 0.0
    %2853 = vmatmul.mubr.f32.gmra.mrb[0].mxu0 %v2774
    %v2854 = vpop.f32.mrb[0].mxu0
    %v2855 = vadd.f32 %v2757, %v2854
    %v2856 = vpop.f32.mrb[0].mxu0
    %v2857 = vadd.f32 %v2757, %v2856
    %2858 = vmatprep.mubr.f32.mxu0 0.0
    %2859 = vmatmul.mubr.f32.gmra.mrb[0].mxu0 %v2777
    %v2860 = vpop.f32.mrb[0].mxu0
    %v2861 = vadd.f32 %v2762, %v2860
    %v2862 = vpop.f32.mrb[0].mxu0
    %v2863 = vadd.f32 %v2762, %v2862
    %2864 = vmatprep.mubr.f32.mxu0 0.0
    %2865 = vmatmul.mubr.f32.gmra.mrb[0].mxu0 %v2780
    %v2866 = vpop.f32.mrb[0].mxu0
    %v2867 = vadd.f32 %v2767, %v2866
    %v2868 = vpop.f32.mrb[0].mxu0
    %v2869 = vadd.f32 %v2767, %v2868
    %2870 = vdwg.mxu0
    %v2871 = vmul.f32 %v1180, %v2849
    %v2872 = vmul.f32 %v1284, %v2851
    %v2873 = vmul.f32 %v1388, %v2855
    %v2874 = vmul.f32 %v1492, %v2857
    %v2875 = vmul.f32 %v1596, %v2861
    %v2876 = vmul.f32 %v1700, %v2863
    %v2877 = vmul.f32 %v1804, %v2867
    %v2878 = vmul.f32 %v1908, %v2869
    %v2879 = vadd.f32 %v2871, %v21
    %v2880 = vadd.f32 %v2872, %v25
    %v2881 = vadd.f32 %v2873, %v21
    %v2882 = vadd.f32 %v2874, %v25
    %v2883 = vadd.f32 %v2875, %v21
    %v2884 = vadd.f32 %v2876, %v25
    %v2885 = vadd.f32 %v2877, %v21
    %v2886 = vadd.f32 %v2878, %v25
    %v2887 = vld [vmem:[%s1 + $0x80] sm:$0xff]
    %v2888 = vld [vmem:[%s1 + $0x88] sm:$0xff]
    %v2889 = vld [vmem:[%s1 + $0x90] sm:$0xff]
    %v2890 = vld [vmem:[%s1 + $0x98] sm:$0xff]
    %2891 = vset.pattern.permute.xlu0 1
    %2892 = vperm.xlu0 %2891, %v2745
    %v2893 = vpop.permute.xlu0 %2892
    %2895 = vset.pattern.permute.xlu0 1
    %2896 = vperm.xlu0 %2895, %v2746
    %v2897 = vpop.permute.xlu0 %2896
    %2899 = vset.pattern.permute.xlu0 1
    %2900 = vperm.xlu0 %2899, %v2747
    %v2901 = vpop.permute.xlu0 %2900
    %2903 = vset.pattern.permute.xlu0 1
    %2904 = vperm.xlu0 %2903, %v2748
    %v2905 = vpop.permute.xlu0 %2904
    %v2908 = vsel %vm2769, %v2887, 0
    %v2911 = vsel %vm2769, %v2888, 0
    %v2914 = vsel %vm2769, %v2889, 0
    %v2917 = vsel %vm2769, %v2890, 0
    %2919 = vmatprep.subr.mxu0 %v2880
    %2920 = vmatpush1.msra.mxu0 %v2879
    %2921 = vmatprep.subr.mxu0 %v2882
    %2922 = vmatpush1.msra.mxu0 %v2881
    %2923 = vmatprep.subr.mxu0 %v2884
    %2924 = vmatpush1.msra.mxu0 %v2883
    %2925 = vmatprep.subr.mxu0 %v2886
    %2926 = vmatpush1.msra.mxu0 %v2885
    %2927 = vmatprep.subr.mxu0 0.0
    %2928 = vmatpush1.msra.mxu0 0.0
    %2929 = vmatprep.subr.mxu0 0.0
    %2930 = vmatpush1.msra.mxu0 0.0
    %2931 = vmatprep.subr.mxu0 0.0
    %2932 = vmatpush1.msra.mxu0 0.0
    %2933 = vmatprep.subr.mxu0 0.0
    %2934 = vmatpush1.msra.mxu0 0.0
    %2935 = vmatprep.subr.mxu0 0.0
    %2936 = vmatpush1.msra.mxu0 0.0
    %2937 = vmatprep.subr.mxu0 0.0
    %2938 = vmatpush1.msra.mxu0 0.0
    %2939 = vmatprep.subr.mxu0 0.0
    %2940 = vmatpush1.msra.mxu0 0.0
    %2941 = vmatprep.subr.mxu0 0.0
    %2942 = vmatpush1.msra.mxu0 0.0
    %2943 = vmatprep.subr.mxu0 0.0
    %2944 = vmatpush1.msra.mxu0 0.0
    %2945 = vmatprep.subr.mxu0 0.0
    %2946 = vmatpush1.msra.mxu0 0.0
    %2947 = vmatprep.subr.mxu0 0.0
    %2948 = vmatpush1.msra.mxu0 0.0
    %2949 = vmatprep.subr.mxu0 0.0
    %2950 = vmatpush1.msra.mxu0 0.0
    %2951 = vmatprep.subr.mxu0 0.0
    %2952 = vmatpush1.msra.mxu0 0.0
    %2953 = vmatprep.subr.mxu0 0.0
    %2954 = vmatpush1.msra.mxu0 0.0
    %2955 = vmatprep.subr.mxu0 0.0
    %2956 = vmatpush1.msra.mxu0 0.0
    %2957 = vmatprep.subr.mxu0 0.0
    %2958 = vmatpush1.msra.mxu0 0.0
    %2959 = vmatprep.subr.mxu0 0.0
    %2960 = vmatpush1.msra.mxu0 0.0
    %2961 = vmatprep.subr.mxu0 0.0
    %2962 = vmatpush1.msra.mxu0 0.0
    %2963 = vmatprep.subr.mxu0 0.0
    %2964 = vmatpush1.msra.mxu0 0.0
    %2965 = vmatprep.subr.mxu0 0.0
    %2966 = vmatpush1.msra.mxu0 0.0
    %2967 = vmatprep.subr.mxu0 0.0
    %2968 = vmatpush1.msra.mxu0 0.0
    %2969 = vmatprep.subr.mxu0 0.0
    %2970 = vmatpush1.msra.mxu0 0.0
    %2971 = vmatprep.subr.mxu0 0.0
    %2972 = vmatpush1.msra.mxu0 0.0
    %2973 = vmatprep.subr.mxu0 0.0
    %2974 = vmatpush1.msra.mxu0 0.0
    %2975 = vmatprep.subr.mxu0 0.0
    %2976 = vmatpush1.msra.mxu0 0.0
    %2977 = vmatprep.subr.mxu0 0.0
    %2978 = vmatpush1.msra.mxu0 0.0
    %2979 = vmatprep.subr.mxu0 0.0
    %2980 = vmatpush1.msra.mxu0 0.0
    %2981 = vmatprep.subr.mxu0 0.0
    %2982 = vmatpush1.msra.mxu0 0.0
    %2983 = vmatprep.mubr.f32.mxu0 0.0
    %2984 = vmatmul.mubr.f32.gmra.mrb[0].mxu0 %v2908
    %v2985 = vpop.f32.mrb[0].mxu0
    %v2986 = vadd.f32 %v2893, %v2985
    %v2987 = vpop.f32.mrb[0].mxu0
    %v2988 = vadd.f32 %v2893, %v2987
    %2989 = vmatprep.mubr.f32.mxu0 0.0
    %2990 = vmatmul.mubr.f32.gmra.mrb[0].mxu0 %v2911
    %v2991 = vpop.f32.mrb[0].mxu0
    %v2992 = vadd.f32 %v2897, %v2991
    %v2993 = vpop.f32.mrb[0].mxu0
    %v2994 = vadd.f32 %v2897, %v2993
    %2995 = vmatprep.mubr.f32.mxu0 0.0
    %2996 = vmatmul.mubr.f32.gmra.mrb[0].mxu0 %v2914
    %v2997 = vpop.f32.mrb[0].mxu0
    %v2998 = vadd.f32 %v2901, %v2997
    %v2999 = vpop.f32.mrb[0].mxu0
    %v3000 = vadd.f32 %v2901, %v2999
    %3001 = vmatprep.mubr.f32.mxu0 0.0
    %3002 = vmatmul.mubr.f32.gmra.mrb[0].mxu0 %v2917
    %v3003 = vpop.f32.mrb[0].mxu0
    %v3004 = vadd.f32 %v2905, %v3003
    %v3005 = vpop.f32.mrb[0].mxu0
    %v3006 = vadd.f32 %v2905, %v3005
    %3007 = vdwg.mxu0
    %v3008 = vmul.f32 %v2012, %v2986
    %v3009 = vmul.f32 %v2116, %v2988
    %v3010 = vmul.f32 %v2220, %v2992
    %v3011 = vmul.f32 %v2324, %v2994
    %v3012 = vmul.f32 %v2428, %v2998
    %v3013 = vmul.f32 %v2532, %v3000
    %v3014 = vmul.f32 %v2636, %v3004
    %v3015 = vmul.f32 %v2740, %v3006
    %v3016 = vadd.f32 %v3008, %v21
    %v3017 = vadd.f32 %v3009, %v25
    %v3018 = vadd.f32 %v3010, %v21
    %v3019 = vadd.f32 %v3011, %v25
    %v3020 = vadd.f32 %v3012, %v21
    %v3021 = vadd.f32 %v3013, %v25
    %v3022 = vadd.f32 %v3014, %v21
    %v3023 = vadd.f32 %v3015, %v25
    %v3024 = vld [vmem:[%s1 + $0xa0] sm:$0xff]
    %v3025 = vld [vmem:[%s2] sm:$0xff]
    %3027 = vset.pattern.permute.xlu0 2
    %3028 = vperm.xlu0 %3027, %v3025
    %v3029 = vpop.permute.xlu0 %3028
    %v3032 = vsel %vm2769, %v3024, 0
    %3034 = vmatprep.subr.mxu0 %v3017
    %3035 = vmatpush1.msra.mxu0 %v3016
    %3036 = vmatprep.subr.mxu0 %v3019
    %3037 = vmatpush1.msra.mxu0 %v3018
    %3038 = vmatprep.subr.mxu0 %v3021
    %3039 = vmatpush1.msra.mxu0 %v3020
    %3040 = vmatprep.subr.mxu0 %v3023
    %3041 = vmatpush1.msra.mxu0 %v3022
    %3042 = vmatprep.subr.mxu0 0.0
    %3043 = vmatpush1.msra.mxu0 0.0
    %3044 = vmatprep.subr.mxu0 0.0
    %3045 = vmatpush1.msra.mxu0 0.0
    %3046 = vmatprep.subr.mxu0 0.0
    %3047 = vmatpush1.msra.mxu0 0.0
    %3048 = vmatprep.subr.mxu0 0.0
    %3049 = vmatpush1.msra.mxu0 0.0
    %3050 = vmatprep.subr.mxu0 0.0
    %3051 = vmatpush1.msra.mxu0 0.0
    %3052 = vmatprep.subr.mxu0 0.0
    %3053 = vmatpush1.msra.mxu0 0.0
    %3054 = vmatprep.subr.mxu0 0.0
    %3055 = vmatpush1.msra.mxu0 0.0
    %3056 = vmatprep.subr.mxu0 0.0
    %3057 = vmatpush1.msra.mxu0 0.0
    %3058 = vmatprep.subr.mxu0 0.0
    %3059 = vmatpush1.msra.mxu0 0.0
    %3060 = vmatprep.subr.mxu0 0.0
    %3061 = vmatpush1.msra.mxu0 0.0
    %3062 = vmatprep.subr.mxu0 0.0
    %3063 = vmatpush1.msra.mxu0 0.0
    %3064 = vmatprep.subr.mxu0 0.0
    %3065 = vmatpush1.msra.mxu0 0.0
    %3066 = vmatprep.subr.mxu0 0.0
    %3067 = vmatpush1.msra.mxu0 0.0
    %3068 = vmatprep.subr.mxu0 0.0
    %3069 = vmatpush1.msra.mxu0 0.0
    %3070 = vmatprep.subr.mxu0 0.0
    %3071 = vmatpush1.msra.mxu0 0.0
    %3072 = vmatprep.subr.mxu0 0.0
    %3073 = vmatpush1.msra.mxu0 0.0
    %3074 = vmatprep.subr.mxu0 0.0
    %3075 = vmatpush1.msra.mxu0 0.0
    %3076 = vmatprep.subr.mxu0 0.0
    %3077 = vmatpush1.msra.mxu0 0.0
    %3078 = vmatprep.subr.mxu0 0.0
    %3079 = vmatpush1.msra.mxu0 0.0
    %3080 = vmatprep.subr.mxu0 0.0
    %3081 = vmatpush1.msra.mxu0 0.0
    %3082 = vmatprep.subr.mxu0 0.0
    %3083 = vmatpush1.msra.mxu0 0.0
    %3084 = vmatprep.subr.mxu0 0.0
    %3085 = vmatpush1.msra.mxu0 0.0
    %3086 = vmatprep.subr.mxu0 0.0
    %3087 = vmatpush1.msra.mxu0 0.0
    %3088 = vmatprep.subr.mxu0 0.0
    %3089 = vmatpush1.msra.mxu0 0.0
    %3090 = vmatprep.subr.mxu0 0.0
    %3091 = vmatpush1.msra.mxu0 0.0
    %3092 = vmatprep.subr.mxu0 0.0
    %3093 = vmatpush1.msra.mxu0 0.0
    %3094 = vmatprep.subr.mxu0 0.0
    %3095 = vmatpush1.msra.mxu0 0.0
    %3096 = vmatprep.subr.mxu0 0.0
    %3097 = vmatpush1.msra.mxu0 0.0
    %3098 = vmatprep.mubr.f32.mxu0 0.0
    %3099 = vmatmul.mubr.f32.gmra.mrb[0].mxu0 %v3032
    %v3100 = vpop.f32.mrb[0].mxu0
    %v3101 = vadd.f32 %v3029, %v3100
    %v3102 = vpop.f32.mrb[0].mxu0
    %v3103 = vadd.f32 %v3029, %v3102
    %3104 = vdwg.mxu0
    %3105 = vst [vmem:[#allocation2] sm:$0xff] %v3101
    %3106 = vst [vmem:[#allocation2 + $0x8] sm:$0xff] %v3103
    // Predicated region
    $region14: #{tpu_custom_call.1} parent=1 // pred_check
      _
    $region15: #{tpu_custom_call.1} parent=1 // pred_check_branch
      %3108 = sbr.rel (0) target = $region17
    $region16: #{tpu_custom_call.1} parent=1 // pred_region
      %s3110 = ssub.s32 256, 256
      %3111 = vsyncadd [#allocation3], %s3110
      %s3113 = sshll.u32 [#allocation2], 4
      %s3114 = int_to_ptr.vmem [resolvable:$true] %s3113
      %3116 = dma.vmem_to_hbm [thread:$0]  %s3114, 256, %s3, [#allocation3]
    $region17: #{tpu_custom_call.1} parent=1 // pred_fallthru
      _
    // Predicated region
    $region18: #{tpu_custom_call.1} parent=1 // pred_check
      _
    $region19: #{tpu_custom_call.1} parent=1 // pred_check_branch
      %3118 = sbr.rel (0) target = $region21
    $region20: #{tpu_custom_call.1} parent=1 // pred_region
      %3119 = dma.done [#allocation3], 256
    $region21: #{tpu_custom_call.1} parent=1 // pred_fallthru
      _
    %3120 = vsyncpa [#allocation3], 1

</llo_original>
